<compile_context>
chip_gen: v5e
topology: v5e:2x2
jax: 0.10.0
libtpu: 0.0.40
codegen_flags: <defaults>
</compile_context>

<pallas_src>
import functools

import jax
import jax.numpy as jnp
from jax.experimental import pallas as pl
from jax.experimental.pallas import tpu as pltpu

LN_EPS = 1e-5


def _layernorm_f32(x, gamma, beta):
    # x: (rows, d_model) float32; gamma/beta: (1, d_model) float32
    mean = jnp.mean(x, axis=-1, keepdims=True)
    xc = x - mean
    var = jnp.mean(xc * xc, axis=-1, keepdims=True)
    return xc * jax.lax.rsqrt(var + LN_EPS) * gamma + beta


def _attn_kernel(w_ref, c_ref, r_ref, rwb_ref, rrb_ref,
                 wq_ref, wk_ref, wv_ref, wr_ref, wo_ref,
                 g_ref, beta_ref, o_ref,
                 *, n_head, d_head, scale, pre_lnorm):
    dt = w_ref.dtype                      # native storage / MXU dtype
    gamma = g_ref[...].astype(jnp.float32)
    beta = beta_ref[...].astype(jnp.float32)

    w_in = w_ref[0]                       # (Q, d_model)
    c_in = c_ref[0]                       # (K, d_model)

    if pre_lnorm:
        # Residual uses the *normalized* w (PyTorch overwrites `w` in place).
        w_res = _layernorm_f32(w_in.astype(jnp.float32), gamma, beta)
        c_n = _layernorm_f32(c_in.astype(jnp.float32), gamma, beta)
        w_mm = w_res.astype(dt)
        c_mm = c_n.astype(dt)
    else:
        w_res = w_in.astype(jnp.float32)
        w_mm = w_in
        c_mm = c_in

    # Projections: native-dtype operands into the MXU, f32 accumulation.
    q = jnp.dot(w_mm, wq_ref[...], preferred_element_type=jnp.float32)       # (Q, H*D)
    k = jnp.dot(c_mm, wk_ref[...], preferred_element_type=jnp.float32)       # (K, H*D)
    v = jnp.dot(c_mm, wv_ref[...], preferred_element_type=jnp.float32)       # (K, H*D)
    # r was pre-shifted (rel_shift folded into its rows) in the wrapper.
    rk = jnp.dot(r_ref[...], wr_ref[...], preferred_element_type=jnp.float32)  # (K, H*D)

    rw_q = q + rwb_ref[...].astype(jnp.float32)   # q + r_w_bias (flattened heads)
    rr_q = q + rrb_ref[...].astype(jnp.float32)   # q + r_r_bias

    wo = wo_ref[...]                              # (H*D, d_model)
    q_len, d_model = w_in.shape[0], w_in.shape[1]

    contract_last = (((1,), (1,)), ((), ()))      # A @ B.T without explicit transpose
    attn_out = jnp.zeros((q_len, d_model), jnp.float32)

    for h in range(n_head):
        lo, hi = h * d_head, (h + 1) * d_head
        ac = jax.lax.dot_general(rw_q[:, lo:hi].astype(dt), k[:, lo:hi].astype(dt),
                                 contract_last, preferred_element_type=jnp.float32)
        bd = jax.lax.dot_general(rr_q[:, lo:hi].astype(dt), rk[:, lo:hi].astype(dt),
                                 contract_last, preferred_element_type=jnp.float32)
        s = (ac + bd) * scale                     # (Q, K) f32
        # TODO(synk): attn_mask support (masked_fill with -1e30) omitted; the
        # PyTorch gate is a Python-level `attn_mask.any().item()` and the
        # example uses attn_mask=None. dropatt/drop are identity at inference.
        m = jnp.max(s, axis=-1, keepdims=True)
        e = jnp.exp(s - m)
        p = e / jnp.sum(e, axis=-1, keepdims=True)
        av = jnp.dot(p.astype(dt), v[:, lo:hi].astype(dt),
                     preferred_element_type=jnp.float32)          # (Q, D)
        # o_net folded per head: concat_h(av_h) @ Wo == sum_h av_h @ Wo[hD:(h+1)D]
        attn_out = attn_out + jnp.dot(av.astype(dt), wo[lo:hi, :],
                                      preferred_element_type=jnp.float32)

    out = w_res + attn_out
    if not pre_lnorm:
        out = _layernorm_f32(out, gamma, beta)
    o_ref[0] = out.astype(o_ref.dtype)


def rel_partial_attn(w, r, r_w_bias, r_r_bias, wq, wk, wv, wr, wo,
                     ln_gamma, ln_beta, *, n_head, d_head,
                     mems=None, pre_lnorm=False):
    """w: [B, qlen, d_model], r: [klen, d_model] -> [B, qlen, d_model].

    Weight layout: wq/wk/wv/wr are [d_model, n_head*d_head] (PyTorch weight.T),
    wo is [n_head*d_head, d_model].
    """
    B, q_len, d_model = w.shape
    hd = n_head * d_head
    c = jnp.concatenate([mems, w], axis=1) if mems is not None else w
    k_len = c.shape[1]
    assert r.shape[0] == k_len and r.shape[1] == d_model

    # Fold _rel_shift into r: the PyTorch shift drops key-column 0 and appends
    # a zero column; since r_net is linear and bias-free this is identical to
    # shifting r's rows up by one and appending a zero row before projection.
    r_shift = jnp.concatenate([r[1:], jnp.zeros((1, d_model), r.dtype)], axis=0)

    rwb = r_w_bias.reshape(1, hd)
    rrb = r_r_bias.reshape(1, hd)
    g2 = ln_gamma.reshape(1, d_model)
    b2 = ln_beta.reshape(1, d_model)
    scale = 1.0 / (d_head ** 0.5)

    kernel = functools.partial(_attn_kernel, n_head=n_head, d_head=d_head,
                               scale=scale, pre_lnorm=pre_lnorm)

    itemsize = w.dtype.itemsize
    flops = int(B * (2 * d_model * hd * (q_len + 3 * k_len)      # q,k,v,r projections
                     + 2 * q_len * k_len * hd * 3                # AC, BD, PV
                     + 2 * q_len * hd * d_model))                # output projection
    transcendentals = int(B * n_head * q_len * k_len)            # exp in softmax
    bytes_accessed = int(itemsize * (w.size + c.size + r.size + w.size
                                     + wq.size + wk.size + wv.size + wr.size + wo.size
                                     + 2 * hd + 2 * d_model))

    out = pl.pallas_call(
        kernel,
        out_shape=jax.ShapeDtypeStruct((B, q_len, d_model), w.dtype),
        grid_spec=pltpu.PrefetchScalarGridSpec(
            num_scalar_prefetch=0,
            grid=(B,),
            in_specs=[
                pl.BlockSpec((1, q_len, d_model), lambda b: (b, 0, 0)),  # w
                pl.BlockSpec((1, k_len, d_model), lambda b: (b, 0, 0)),  # c = [mems; w]
                pl.BlockSpec((k_len, d_model), lambda b: (0, 0)),        # r (pre-shifted)
                pl.BlockSpec((1, hd), lambda b: (0, 0)),                 # r_w_bias (flat)
                pl.BlockSpec((1, hd), lambda b: (0, 0)),                 # r_r_bias (flat)
                pl.BlockSpec((d_model, hd), lambda b: (0, 0)),           # Wq
                pl.BlockSpec((d_model, hd), lambda b: (0, 0)),           # Wk
                pl.BlockSpec((d_model, hd), lambda b: (0, 0)),           # Wv
                pl.BlockSpec((d_model, hd), lambda b: (0, 0)),           # Wr
                pl.BlockSpec((hd, d_model), lambda b: (0, 0)),           # Wo
                pl.BlockSpec((1, d_model), lambda b: (0, 0)),            # ln gamma
                pl.BlockSpec((1, d_model), lambda b: (0, 0)),            # ln beta
            ],
            out_specs=pl.BlockSpec((1, q_len, d_model), lambda b: (b, 0, 0)),
        ),
        compiler_params=pltpu.CompilerParams(
            dimension_semantics=("parallel",),       # batch -> both TCs on v7x
            vmem_limit_bytes=48 * 1024 * 1024,
        ),
        cost_estimate=pl.CostEstimate(flops=flops,
                                      transcendentals=transcendentals,
                                      bytes_accessed=bytes_accessed),
    )(w, c, r_shift, rwb, rrb, wq, wk, wv, wr, wo, g2, b2)
    return out


def _reference(w, r, r_w_bias, r_r_bias, wq, wk, wv, wr, wo, g, b,
               *, n_head, d_head, mems, pre_lnorm):
    B, q_len, d_model = w.shape
    c = jnp.concatenate([mems, w], axis=1) if mems is not None else w
    k_len = c.shape[1]
    scale = 1.0 / (d_head ** 0.5)

    def ln(x):
        m = jnp.mean(x, axis=-1, keepdims=True)
        v = jnp.mean((x - m) ** 2, axis=-1, keepdims=True)
        return (x - m) * jax.lax.rsqrt(v + LN_EPS) * g + b

    wn = ln(w) if pre_lnorm else w
    cn = ln(c) if pre_lnorm else c
    r_head_k = (r @ wr).reshape(k_len, n_head, d_head)
    q = (wn @ wq).reshape(B, q_len, n_head, d_head)
    kh = (cn @ wk).reshape(B, k_len, n_head, d_head)
    vh = (cn @ wv).reshape(B, k_len, n_head, d_head)
    AC = jnp.einsum('bind,bjnd->bijn', q + r_w_bias, kh)
    BD = jnp.einsum('bind,jnd->bijn', q + r_r_bias, r_head_k)
    # torch _rel_shift: cat zero col at end of dim 2, then drop col 0.
    BD = jnp.concatenate([BD[:, :, 1:, :], jnp.zeros_like(BD[:, :, :1, :])], axis=2)
    score = (AC + BD) * scale
    prob = jax.nn.softmax(score, axis=2)
    av = jnp.einsum('bijn,bjnd->bind', prob, vh).reshape(B, q_len, n_head * d_head)
    out = wn + av @ wo
    if not pre_lnorm:
        out = ln(out)
    return out


if __name__ == "__main__":
    # Small shapes consistent with the module: bsz=2, qlen=8, mem_len=8,
    # d_model=32, n_head=4, d_head=8 (n_head*d_head = 32), klen = 16.
    B, q_len, m_len = 2, 8, 8
    d_model, n_head, d_head = 32, 4, 8
    k_len = q_len + m_len
    hd = n_head * d_head

    key = jax.random.PRNGKey(0)
    ks = jax.random.split(key, 12)

    w = jax.random.normal(ks[0], (B, q_len, d_model), jnp.float32)
    mems = jax.random.normal(ks[1], (B, m_len, d_model), jnp.float32)
    r = jax.random.normal(ks[2], (k_len, d_model), jnp.float32)

    # nn.init.normal_(weight, 0, 1/sqrt(d_head)) for q/k/v/o; r_net uses
    # 1/sqrt(n_head*d_head). Stored as [in, out] (PyTorch weight.T).
    std = 1.0 / (d_head ** 0.5)
    wq = std * jax.random.normal(ks[3], (d_model, hd), jnp.float32)
    wk = std * jax.random.normal(ks[4], (d_model, hd), jnp.float32)
    wv = std * jax.random.normal(ks[5], (d_model, hd), jnp.float32)
    wo = std * jax.random.normal(ks[6], (hd, d_model), jnp.float32)
    wr = (1.0 / hd ** 0.5) * jax.random.normal(ks[7], (d_model, hd), jnp.float32)
    r_w_bias = 0.1 * jax.random.normal(ks[8], (n_head, d_head), jnp.float32)
    r_r_bias = 0.1 * jax.random.normal(ks[9], (n_head, d_head), jnp.float32)
    ln_gamma = 1.0 + 0.1 * jax.random.normal(ks[10], (d_model,), jnp.float32)
    ln_beta = 0.1 * jax.random.normal(ks[11], (d_model,), jnp.float32)

    ok = True
    for pre_lnorm in (False, True):
        out = rel_partial_attn(w, r, r_w_bias, r_r_bias, wq, wk, wv, wr, wo,
                               ln_gamma, ln_beta, n_head=n_head, d_head=d_head,
                               mems=mems, pre_lnorm=pre_lnorm)
        out = jax.block_until_ready(out)
        ref = _reference(w, r, r_w_bias, r_r_bias, wq, wk, wv, wr, wo,
                         ln_gamma, ln_beta, n_head=n_head, d_head=d_head,
                         mems=mems, pre_lnorm=pre_lnorm)
        ok = ok and bool(jnp.allclose(out, ref, atol=2e-4, rtol=2e-4))

    print("KERNEL_OK" if ok else "KERNEL_MISMATCH")
</pallas_src>

<mosaic_0001>
module attributes {stable_mosaic.version = 11 : i64} {
  func.func @_attn_kernel(%arg0: i32, %arg1: memref<1x8x32xf32, #tpu.memory_space<vmem>>, %arg2: memref<1x16x32xf32, #tpu.memory_space<vmem>>, %arg3: memref<16x32xf32, #tpu.memory_space<vmem>>, %arg4: memref<1x32xf32, #tpu.memory_space<vmem>>, %arg5: memref<1x32xf32, #tpu.memory_space<vmem>>, %arg6: memref<32x32xf32, #tpu.memory_space<vmem>>, %arg7: memref<32x32xf32, #tpu.memory_space<vmem>>, %arg8: memref<32x32xf32, #tpu.memory_space<vmem>>, %arg9: memref<32x32xf32, #tpu.memory_space<vmem>>, %arg10: memref<32x32xf32, #tpu.memory_space<vmem>>, %arg11: memref<1x32xf32, #tpu.memory_space<vmem>>, %arg12: memref<1x32xf32, #tpu.memory_space<vmem>>, %arg13: memref<1x8x32xf32, #tpu.memory_space<vmem>>) attributes {dimension_semantics = [#tpu.dimension_semantics<parallel>], iteration_bounds = array<i64: 2>, scalar_prefetch = 0 : i64, scratch_operands = 0 : i64, tpu.core_type = #tpu.core_type<tc>, window_params = [{transform_indices = @transform_0, window_bounds = array<i64: 1, 8, 32>}, {transform_indices = @transform_1, window_bounds = array<i64: 1, 16, 32>}, {pipeline_mode = #tpu.pipeline_mode<synchronous>, transform_indices = @transform_2, window_bounds = array<i64: 16, 32>}, {pipeline_mode = #tpu.pipeline_mode<synchronous>, transform_indices = @transform_3, window_bounds = array<i64: 1, 32>}, {pipeline_mode = #tpu.pipeline_mode<synchronous>, transform_indices = @transform_4, window_bounds = array<i64: 1, 32>}, {pipeline_mode = #tpu.pipeline_mode<synchronous>, transform_indices = @transform_5, window_bounds = array<i64: 32, 32>}, {pipeline_mode = #tpu.pipeline_mode<synchronous>, transform_indices = @transform_6, window_bounds = array<i64: 32, 32>}, {pipeline_mode = #tpu.pipeline_mode<synchronous>, transform_indices = @transform_7, window_bounds = array<i64: 32, 32>}, {pipeline_mode = #tpu.pipeline_mode<synchronous>, transform_indices = @transform_8, window_bounds = array<i64: 32, 32>}, {pipeline_mode = #tpu.pipeline_mode<synchronous>, transform_indices = @transform_9, window_bounds = array<i64: 32, 32>}, {pipeline_mode = #tpu.pipeline_mode<synchronous>, transform_indices = @transform_10, window_bounds = array<i64: 1, 32>}, {pipeline_mode = #tpu.pipeline_mode<synchronous>, transform_indices = @transform_11, window_bounds = array<i64: 1, 32>}, {transform_indices = @transform_12, window_bounds = array<i64: 1, 8, 32>}]} {
    %c0 = arith.constant 0 : index
    %c0_0 = arith.constant 0 : index
    %0 = vector.load %arg11[%c0, %c0_0] : memref<1x32xf32, #tpu.memory_space<vmem>>, vector<1x32xf32>
    %c0_1 = arith.constant 0 : index
    %c0_2 = arith.constant 0 : index
    %1 = vector.load %arg12[%c0_1, %c0_2] : memref<1x32xf32, #tpu.memory_space<vmem>>, vector<1x32xf32>
    %c0_3 = arith.constant 0 : index
    %c0_4 = arith.constant 0 : index
    %c0_5 = arith.constant 0 : index
    %2 = vector.load %arg1[%c0_3, %c0_4, %c0_5] : memref<1x8x32xf32, #tpu.memory_space<vmem>>, vector<1x8x32xf32>
    %3 = vector.shape_cast %2 : vector<1x8x32xf32> to vector<8x32xf32>
    %c0_6 = arith.constant 0 : index
    %c0_7 = arith.constant 0 : index
    %c0_8 = arith.constant 0 : index
    %4 = vector.load %arg2[%c0_6, %c0_7, %c0_8] : memref<1x16x32xf32, #tpu.memory_space<vmem>>, vector<1x16x32xf32>
    %5 = vector.shape_cast %4 : vector<1x16x32xf32> to vector<16x32xf32>
    %c0_9 = arith.constant 0 : index
    %c0_10 = arith.constant 0 : index
    %6 = vector.load %arg6[%c0_9, %c0_10] : memref<32x32xf32, #tpu.memory_space<vmem>>, vector<32x32xf32>
    %cst = arith.constant dense<0.000000e+00> : vector<8x32xf32>
    %7 = tpu.matmul %3, %6, %cst {dimension_numbers = #tpu.dot_dimension_numbers<[1], [0], [0], [1], [0, 0, 1, 1], [], []>} : vector<8x32xf32>, vector<32x32xf32>, vector<8x32xf32> -> vector<8x32xf32>
    %c0_11 = arith.constant 0 : index
    %c0_12 = arith.constant 0 : index
    %8 = vector.load %arg7[%c0_11, %c0_12] : memref<32x32xf32, #tpu.memory_space<vmem>>, vector<32x32xf32>
    %cst_13 = arith.constant dense<0.000000e+00> : vector<16x32xf32>
    %9 = tpu.matmul %5, %8, %cst_13 {dimension_numbers = #tpu.dot_dimension_numbers<[1], [0], [0], [1], [0, 0, 1, 1], [], []>} : vector<16x32xf32>, vector<32x32xf32>, vector<16x32xf32> -> vector<16x32xf32>
    %c0_14 = arith.constant 0 : index
    %c0_15 = arith.constant 0 : index
    %10 = vector.load %arg8[%c0_14, %c0_15] : memref<32x32xf32, #tpu.memory_space<vmem>>, vector<32x32xf32>
    %cst_16 = arith.constant dense<0.000000e+00> : vector<16x32xf32>
    %11 = tpu.matmul %5, %10, %cst_16 {dimension_numbers = #tpu.dot_dimension_numbers<[1], [0], [0], [1], [0, 0, 1, 1], [], []>} : vector<16x32xf32>, vector<32x32xf32>, vector<16x32xf32> -> vector<16x32xf32>
    %c0_17 = arith.constant 0 : index
    %c0_18 = arith.constant 0 : index
    %12 = vector.load %arg3[%c0_17, %c0_18] : memref<16x32xf32, #tpu.memory_space<vmem>>, vector<16x32xf32>
    %c0_19 = arith.constant 0 : index
    %c0_20 = arith.constant 0 : index
    %13 = vector.load %arg9[%c0_19, %c0_20] : memref<32x32xf32, #tpu.memory_space<vmem>>, vector<32x32xf32>
    %cst_21 = arith.constant dense<0.000000e+00> : vector<16x32xf32>
    %14 = tpu.matmul %12, %13, %cst_21 {dimension_numbers = #tpu.dot_dimension_numbers<[1], [0], [0], [1], [0, 0, 1, 1], [], []>} : vector<16x32xf32>, vector<32x32xf32>, vector<16x32xf32> -> vector<16x32xf32>
    %c0_22 = arith.constant 0 : index
    %c0_23 = arith.constant 0 : index
    %15 = vector.load %arg4[%c0_22, %c0_23] : memref<1x32xf32, #tpu.memory_space<vmem>>, vector<1x32xf32>
    %16 = vector.broadcast %15 : vector<1x32xf32> to vector<8x32xf32>
    %17 = arith.addf %7, %16 : vector<8x32xf32>
    %c0_24 = arith.constant 0 : index
    %c0_25 = arith.constant 0 : index
    %18 = vector.load %arg5[%c0_24, %c0_25] : memref<1x32xf32, #tpu.memory_space<vmem>>, vector<1x32xf32>
    %19 = vector.broadcast %18 : vector<1x32xf32> to vector<8x32xf32>
    %20 = arith.addf %7, %19 : vector<8x32xf32>
    %c0_26 = arith.constant 0 : index
    %c0_27 = arith.constant 0 : index
    %21 = vector.load %arg10[%c0_26, %c0_27] : memref<32x32xf32, #tpu.memory_space<vmem>>, vector<32x32xf32>
    %cst_28 = arith.constant 0.000000e+00 : f32
    %22 = vector.broadcast %cst_28 : f32 to vector<8x32xf32>
    %23 = vector.extract_strided_slice %17 {offsets = [0, 0], sizes = [8, 8], strides = [1, 1]} : vector<8x32xf32> to vector<8x8xf32>
    %24 = vector.extract_strided_slice %9 {offsets = [0, 0], sizes = [16, 8], strides = [1, 1]} : vector<16x32xf32> to vector<16x8xf32>
    %cst_29 = arith.constant dense<0.000000e+00> : vector<8x16xf32>
    %25 = tpu.matmul %23, %24, %cst_29 {dimension_numbers = #tpu.dot_dimension_numbers<[1], [1], [0], [0], [0, 0, 1, 0], [], []>} : vector<8x8xf32>, vector<16x8xf32>, vector<8x16xf32> -> vector<8x16xf32>
    %26 = vector.extract_strided_slice %20 {offsets = [0, 0], sizes = [8, 8], strides = [1, 1]} : vector<8x32xf32> to vector<8x8xf32>
    %27 = vector.extract_strided_slice %14 {offsets = [0, 0], sizes = [16, 8], strides = [1, 1]} : vector<16x32xf32> to vector<16x8xf32>
    %cst_30 = arith.constant dense<0.000000e+00> : vector<8x16xf32>
    %28 = tpu.matmul %26, %27, %cst_30 {dimension_numbers = #tpu.dot_dimension_numbers<[1], [1], [0], [0], [0, 0, 1, 0], [], []>} : vector<8x8xf32>, vector<16x8xf32>, vector<8x16xf32> -> vector<8x16xf32>
    %29 = arith.addf %25, %28 : vector<8x16xf32>
    %cst_31 = arith.constant 0.353553385 : f32
    %30 = vector.broadcast %cst_31 : f32 to vector<8x16xf32>
    %31 = arith.mulf %29, %30 : vector<8x16xf32>
    %cst_32 = arith.constant dense<0xFF800000> : vector<8xf32>
    %32 = vector.multi_reduction <maximumf>, %31, %cst_32 [1] : vector<8x16xf32> to vector<8xf32>
    %33 = vector.shape_cast %32 : vector<8xf32> to vector<8x1xf32>
    %34 = vector.broadcast %33 : vector<8x1xf32> to vector<8x16xf32>
    %35 = arith.subf %31, %34 : vector<8x16xf32>
    %36 = math.exp %35 : vector<8x16xf32>
    %cst_33 = arith.constant dense<0.000000e+00> : vector<8xf32>
    %37 = vector.multi_reduction <add>, %36, %cst_33 [1] : vector<8x16xf32> to vector<8xf32>
    %38 = vector.shape_cast %37 : vector<8xf32> to vector<8x1xf32>
    %39 = vector.broadcast %38 : vector<8x1xf32> to vector<8x16xf32>
    %40 = arith.divf %36, %39 : vector<8x16xf32>
    %41 = vector.extract_strided_slice %11 {offsets = [0, 0], sizes = [16, 8], strides = [1, 1]} : vector<16x32xf32> to vector<16x8xf32>
    %cst_34 = arith.constant dense<0.000000e+00> : vector<8x8xf32>
    %42 = tpu.matmul %40, %41, %cst_34 {dimension_numbers = #tpu.dot_dimension_numbers<[1], [0], [0], [1], [0, 0, 1, 1], [], []>} : vector<8x16xf32>, vector<16x8xf32>, vector<8x8xf32> -> vector<8x8xf32>
    %43 = vector.extract_strided_slice %21 {offsets = [0, 0], sizes = [8, 32], strides = [1, 1]} : vector<32x32xf32> to vector<8x32xf32>
    %cst_35 = arith.constant dense<0.000000e+00> : vector<8x32xf32>
    %44 = tpu.matmul %42, %43, %cst_35 {dimension_numbers = #tpu.dot_dimension_numbers<[1], [0], [0], [1], [0, 0, 1, 1], [], []>} : vector<8x8xf32>, vector<8x32xf32>, vector<8x32xf32> -> vector<8x32xf32>
    %45 = arith.addf %22, %44 : vector<8x32xf32>
    %46 = vector.extract_strided_slice %17 {offsets = [0, 8], sizes = [8, 8], strides = [1, 1]} : vector<8x32xf32> to vector<8x8xf32>
    %47 = vector.extract_strided_slice %9 {offsets = [0, 8], sizes = [16, 8], strides = [1, 1]} : vector<16x32xf32> to vector<16x8xf32>
    %cst_36 = arith.constant dense<0.000000e+00> : vector<8x16xf32>
    %48 = tpu.matmul %46, %47, %cst_36 {dimension_numbers = #tpu.dot_dimension_numbers<[1], [1], [0], [0], [0, 0, 1, 0], [], []>} : vector<8x8xf32>, vector<16x8xf32>, vector<8x16xf32> -> vector<8x16xf32>
    %49 = vector.extract_strided_slice %20 {offsets = [0, 8], sizes = [8, 8], strides = [1, 1]} : vector<8x32xf32> to vector<8x8xf32>
    %50 = vector.extract_strided_slice %14 {offsets = [0, 8], sizes = [16, 8], strides = [1, 1]} : vector<16x32xf32> to vector<16x8xf32>
    %cst_37 = arith.constant dense<0.000000e+00> : vector<8x16xf32>
    %51 = tpu.matmul %49, %50, %cst_37 {dimension_numbers = #tpu.dot_dimension_numbers<[1], [1], [0], [0], [0, 0, 1, 0], [], []>} : vector<8x8xf32>, vector<16x8xf32>, vector<8x16xf32> -> vector<8x16xf32>
    %52 = arith.addf %48, %51 : vector<8x16xf32>
    %cst_38 = arith.constant 0.353553385 : f32
    %53 = vector.broadcast %cst_38 : f32 to vector<8x16xf32>
    %54 = arith.mulf %52, %53 : vector<8x16xf32>
    %cst_39 = arith.constant dense<0xFF800000> : vector<8xf32>
    %55 = vector.multi_reduction <maximumf>, %54, %cst_39 [1] : vector<8x16xf32> to vector<8xf32>
    %56 = vector.shape_cast %55 : vector<8xf32> to vector<8x1xf32>
    %57 = vector.broadcast %56 : vector<8x1xf32> to vector<8x16xf32>
    %58 = arith.subf %54, %57 : vector<8x16xf32>
    %59 = math.exp %58 : vector<8x16xf32>
    %cst_40 = arith.constant dense<0.000000e+00> : vector<8xf32>
    %60 = vector.multi_reduction <add>, %59, %cst_40 [1] : vector<8x16xf32> to vector<8xf32>
    %61 = vector.shape_cast %60 : vector<8xf32> to vector<8x1xf32>
    %62 = vector.broadcast %61 : vector<8x1xf32> to vector<8x16xf32>
    %63 = arith.divf %59, %62 : vector<8x16xf32>
    %64 = vector.extract_strided_slice %11 {offsets = [0, 8], sizes = [16, 8], strides = [1, 1]} : vector<16x32xf32> to vector<16x8xf32>
    %cst_41 = arith.constant dense<0.000000e+00> : vector<8x8xf32>
    %65 = tpu.matmul %63, %64, %cst_41 {dimension_numbers = #tpu.dot_dimension_numbers<[1], [0], [0], [1], [0, 0, 1, 1], [], []>} : vector<8x16xf32>, vector<16x8xf32>, vector<8x8xf32> -> vector<8x8xf32>
    %66 = vector.extract_strided_slice %21 {offsets = [8, 0], sizes = [8, 32], strides = [1, 1]} : vector<32x32xf32> to vector<8x32xf32>
    %cst_42 = arith.constant dense<0.000000e+00> : vector<8x32xf32>
    %67 = tpu.matmul %65, %66, %cst_42 {dimension_numbers = #tpu.dot_dimension_numbers<[1], [0], [0], [1], [0, 0, 1, 1], [], []>} : vector<8x8xf32>, vector<8x32xf32>, vector<8x32xf32> -> vector<8x32xf32>
    %68 = arith.addf %45, %67 : vector<8x32xf32>
    %69 = vector.extract_strided_slice %17 {offsets = [0, 16], sizes = [8, 8], strides = [1, 1]} : vector<8x32xf32> to vector<8x8xf32>
    %70 = vector.extract_strided_slice %9 {offsets = [0, 16], sizes = [16, 8], strides = [1, 1]} : vector<16x32xf32> to vector<16x8xf32>
    %cst_43 = arith.constant dense<0.000000e+00> : vector<8x16xf32>
    %71 = tpu.matmul %69, %70, %cst_43 {dimension_numbers = #tpu.dot_dimension_numbers<[1], [1], [0], [0], [0, 0, 1, 0], [], []>} : vector<8x8xf32>, vector<16x8xf32>, vector<8x16xf32> -> vector<8x16xf32>
    %72 = vector.extract_strided_slice %20 {offsets = [0, 16], sizes = [8, 8], strides = [1, 1]} : vector<8x32xf32> to vector<8x8xf32>
    %73 = vector.extract_strided_slice %14 {offsets = [0, 16], sizes = [16, 8], strides = [1, 1]} : vector<16x32xf32> to vector<16x8xf32>
    %cst_44 = arith.constant dense<0.000000e+00> : vector<8x16xf32>
    %74 = tpu.matmul %72, %73, %cst_44 {dimension_numbers = #tpu.dot_dimension_numbers<[1], [1], [0], [0], [0, 0, 1, 0], [], []>} : vector<8x8xf32>, vector<16x8xf32>, vector<8x16xf32> -> vector<8x16xf32>
    %75 = arith.addf %71, %74 : vector<8x16xf32>
    %cst_45 = arith.constant 0.353553385 : f32
    %76 = vector.broadcast %cst_45 : f32 to vector<8x16xf32>
    %77 = arith.mulf %75, %76 : vector<8x16xf32>
    %cst_46 = arith.constant dense<0xFF800000> : vector<8xf32>
    %78 = vector.multi_reduction <maximumf>, %77, %cst_46 [1] : vector<8x16xf32> to vector<8xf32>
    %79 = vector.shape_cast %78 : vector<8xf32> to vector<8x1xf32>
    %80 = vector.broadcast %79 : vector<8x1xf32> to vector<8x16xf32>
    %81 = arith.subf %77, %80 : vector<8x16xf32>
    %82 = math.exp %81 : vector<8x16xf32>
    %cst_47 = arith.constant dense<0.000000e+00> : vector<8xf32>
    %83 = vector.multi_reduction <add>, %82, %cst_47 [1] : vector<8x16xf32> to vector<8xf32>
    %84 = vector.shape_cast %83 : vector<8xf32> to vector<8x1xf32>
    %85 = vector.broadcast %84 : vector<8x1xf32> to vector<8x16xf32>
    %86 = arith.divf %82, %85 : vector<8x16xf32>
    %87 = vector.extract_strided_slice %11 {offsets = [0, 16], sizes = [16, 8], strides = [1, 1]} : vector<16x32xf32> to vector<16x8xf32>
    %cst_48 = arith.constant dense<0.000000e+00> : vector<8x8xf32>
    %88 = tpu.matmul %86, %87, %cst_48 {dimension_numbers = #tpu.dot_dimension_numbers<[1], [0], [0], [1], [0, 0, 1, 1], [], []>} : vector<8x16xf32>, vector<16x8xf32>, vector<8x8xf32> -> vector<8x8xf32>
    %89 = vector.extract_strided_slice %21 {offsets = [16, 0], sizes = [8, 32], strides = [1, 1]} : vector<32x32xf32> to vector<8x32xf32>
    %cst_49 = arith.constant dense<0.000000e+00> : vector<8x32xf32>
    %90 = tpu.matmul %88, %89, %cst_49 {dimension_numbers = #tpu.dot_dimension_numbers<[1], [0], [0], [1], [0, 0, 1, 1], [], []>} : vector<8x8xf32>, vector<8x32xf32>, vector<8x32xf32> -> vector<8x32xf32>
    %91 = arith.addf %68, %90 : vector<8x32xf32>
    %92 = vector.extract_strided_slice %17 {offsets = [0, 24], sizes = [8, 8], strides = [1, 1]} : vector<8x32xf32> to vector<8x8xf32>
    %93 = vector.extract_strided_slice %9 {offsets = [0, 24], sizes = [16, 8], strides = [1, 1]} : vector<16x32xf32> to vector<16x8xf32>
    %cst_50 = arith.constant dense<0.000000e+00> : vector<8x16xf32>
    %94 = tpu.matmul %92, %93, %cst_50 {dimension_numbers = #tpu.dot_dimension_numbers<[1], [1], [0], [0], [0, 0, 1, 0], [], []>} : vector<8x8xf32>, vector<16x8xf32>, vector<8x16xf32> -> vector<8x16xf32>
    %95 = vector.extract_strided_slice %20 {offsets = [0, 24], sizes = [8, 8], strides = [1, 1]} : vector<8x32xf32> to vector<8x8xf32>
    %96 = vector.extract_strided_slice %14 {offsets = [0, 24], sizes = [16, 8], strides = [1, 1]} : vector<16x32xf32> to vector<16x8xf32>
    %cst_51 = arith.constant dense<0.000000e+00> : vector<8x16xf32>
    %97 = tpu.matmul %95, %96, %cst_51 {dimension_numbers = #tpu.dot_dimension_numbers<[1], [1], [0], [0], [0, 0, 1, 0], [], []>} : vector<8x8xf32>, vector<16x8xf32>, vector<8x16xf32> -> vector<8x16xf32>
    %98 = arith.addf %94, %97 : vector<8x16xf32>
    %cst_52 = arith.constant 0.353553385 : f32
    %99 = vector.broadcast %cst_52 : f32 to vector<8x16xf32>
    %100 = arith.mulf %98, %99 : vector<8x16xf32>
    %cst_53 = arith.constant dense<0xFF800000> : vector<8xf32>
    %101 = vector.multi_reduction <maximumf>, %100, %cst_53 [1] : vector<8x16xf32> to vector<8xf32>
    %102 = vector.shape_cast %101 : vector<8xf32> to vector<8x1xf32>
    %103 = vector.broadcast %102 : vector<8x1xf32> to vector<8x16xf32>
    %104 = arith.subf %100, %103 : vector<8x16xf32>
    %105 = math.exp %104 : vector<8x16xf32>
    %cst_54 = arith.constant dense<0.000000e+00> : vector<8xf32>
    %106 = vector.multi_reduction <add>, %105, %cst_54 [1] : vector<8x16xf32> to vector<8xf32>
    %107 = vector.shape_cast %106 : vector<8xf32> to vector<8x1xf32>
    %108 = vector.broadcast %107 : vector<8x1xf32> to vector<8x16xf32>
    %109 = arith.divf %105, %108 : vector<8x16xf32>
    %110 = vector.extract_strided_slice %11 {offsets = [0, 24], sizes = [16, 8], strides = [1, 1]} : vector<16x32xf32> to vector<16x8xf32>
    %cst_55 = arith.constant dense<0.000000e+00> : vector<8x8xf32>
    %111 = tpu.matmul %109, %110, %cst_55 {dimension_numbers = #tpu.dot_dimension_numbers<[1], [0], [0], [1], [0, 0, 1, 1], [], []>} : vector<8x16xf32>, vector<16x8xf32>, vector<8x8xf32> -> vector<8x8xf32>
    %112 = vector.extract_strided_slice %21 {offsets = [24, 0], sizes = [8, 32], strides = [1, 1]} : vector<32x32xf32> to vector<8x32xf32>
    %cst_56 = arith.constant dense<0.000000e+00> : vector<8x32xf32>
    %113 = tpu.matmul %111, %112, %cst_56 {dimension_numbers = #tpu.dot_dimension_numbers<[1], [0], [0], [1], [0, 0, 1, 1], [], []>} : vector<8x8xf32>, vector<8x32xf32>, vector<8x32xf32> -> vector<8x32xf32>
    %114 = arith.addf %91, %113 : vector<8x32xf32>
    %115 = arith.addf %3, %114 : vector<8x32xf32>
    %cst_57 = arith.constant dense<0.000000e+00> : vector<8xf32>
    %116 = vector.multi_reduction <add>, %115, %cst_57 [1] : vector<8x32xf32> to vector<8xf32>
    %117 = vector.shape_cast %116 : vector<8xf32> to vector<8x1xf32>
    %cst_58 = arith.constant 3.200000e+01 : f32
    %118 = vector.broadcast %cst_58 : f32 to vector<8x1xf32>
    %119 = arith.divf %117, %118 : vector<8x1xf32>
    %120 = vector.broadcast %119 : vector<8x1xf32> to vector<8x32xf32>
    %121 = arith.subf %115, %120 : vector<8x32xf32>
    %122 = arith.mulf %121, %121 : vector<8x32xf32>
    %cst_59 = arith.constant dense<0.000000e+00> : vector<8xf32>
    %123 = vector.multi_reduction <add>, %122, %cst_59 [1] : vector<8x32xf32> to vector<8xf32>
    %124 = vector.shape_cast %123 : vector<8xf32> to vector<8x1xf32>
    %cst_60 = arith.constant 3.200000e+01 : f32
    %125 = vector.broadcast %cst_60 : f32 to vector<8x1xf32>
    %126 = arith.divf %124, %125 : vector<8x1xf32>
    %cst_61 = arith.constant 9.99999974E-6 : f32
    %127 = vector.broadcast %cst_61 : f32 to vector<8x1xf32>
    %128 = arith.addf %126, %127 : vector<8x1xf32>
    %129 = math.rsqrt %128 : vector<8x1xf32>
    %130 = vector.broadcast %129 : vector<8x1xf32> to vector<8x32xf32>
    %131 = arith.mulf %121, %130 : vector<8x32xf32>
    %132 = vector.broadcast %0 : vector<1x32xf32> to vector<8x32xf32>
    %133 = arith.mulf %131, %132 : vector<8x32xf32>
    %134 = vector.broadcast %1 : vector<1x32xf32> to vector<8x32xf32>
    %135 = arith.addf %133, %134 : vector<8x32xf32>
    %c0_62 = arith.constant 0 : index
    %c0_63 = arith.constant 0 : index
    %c0_64 = arith.constant 0 : index
    %136 = vector.load %arg13[%c0_62, %c0_63, %c0_64] : memref<1x8x32xf32, #tpu.memory_space<vmem>>, vector<1x8x32xf32>
    %137 = vector.shape_cast %136 : vector<1x8x32xf32> to vector<8x32xf32>
    %138 = vector.shape_cast %135 : vector<8x32xf32> to vector<1x8x32xf32>
    tpu.vector_store %arg13[%c0_62, %c0_63, %c0_64], %138 {strides = array<i32>} : memref<1x8x32xf32, #tpu.memory_space<vmem>>, vector<1x8x32xf32>,
    return
  }
  func.func @transform_0(%arg0: i32) -> (i32, i32, i32) {
    %c0_i32 = arith.constant 0 : i32
    %c0_i32_0 = arith.constant 0 : i32
    %c0_i32_1 = arith.constant 0 : i32
    return %arg0, %c0_i32, %c0_i32_0 : i32, i32, i32
  }
  func.func @transform_1(%arg0: i32) -> (i32, i32, i32) {
    %c0_i32 = arith.constant 0 : i32
    %c0_i32_0 = arith.constant 0 : i32
    %c0_i32_1 = arith.constant 0 : i32
    return %arg0, %c0_i32, %c0_i32_0 : i32, i32, i32
  }
  func.func @transform_2(%arg0: i32) -> (i32, i32) {
    %c0_i32 = arith.constant 0 : i32
    %c0_i32_0 = arith.constant 0 : i32
    %c0_i32_1 = arith.constant 0 : i32
    return %c0_i32, %c0_i32_0 : i32, i32
  }
  func.func @transform_3(%arg0: i32) -> (i32, i32) {
    %c0_i32 = arith.constant 0 : i32
    %c0_i32_0 = arith.constant 0 : i32
    %c0_i32_1 = arith.constant 0 : i32
    return %c0_i32, %c0_i32_0 : i32, i32
  }
  func.func @transform_4(%arg0: i32) -> (i32, i32) {
    %c0_i32 = arith.constant 0 : i32
    %c0_i32_0 = arith.constant 0 : i32
    %c0_i32_1 = arith.constant 0 : i32
    return %c0_i32, %c0_i32_0 : i32, i32
  }
  func.func @transform_5(%arg0: i32) -> (i32, i32) {
    %c0_i32 = arith.constant 0 : i32
    %c0_i32_0 = arith.constant 0 : i32
    %c0_i32_1 = arith.constant 0 : i32
    return %c0_i32, %c0_i32_0 : i32, i32
  }
  func.func @transform_6(%arg0: i32) -> (i32, i32) {
    %c0_i32 = arith.constant 0 : i32
    %c0_i32_0 = arith.constant 0 : i32
    %c0_i32_1 = arith.constant 0 : i32
    return %c0_i32, %c0_i32_0 : i32, i32
  }
  func.func @transform_7(%arg0: i32) -> (i32, i32) {
    %c0_i32 = arith.constant 0 : i32
    %c0_i32_0 = arith.constant 0 : i32
    %c0_i32_1 = arith.constant 0 : i32
    return %c0_i32, %c0_i32_0 : i32, i32
  }
  func.func @transform_8(%arg0: i32) -> (i32, i32) {
    %c0_i32 = arith.constant 0 : i32
    %c0_i32_0 = arith.constant 0 : i32
    %c0_i32_1 = arith.constant 0 : i32
    return %c0_i32, %c0_i32_0 : i32, i32
  }
  func.func @transform_9(%arg0: i32) -> (i32, i32) {
    %c0_i32 = arith.constant 0 : i32
    %c0_i32_0 = arith.constant 0 : i32
    %c0_i32_1 = arith.constant 0 : i32
    return %c0_i32, %c0_i32_0 : i32, i32
  }
  func.func @transform_10(%arg0: i32) -> (i32, i32) {
    %c0_i32 = arith.constant 0 : i32
    %c0_i32_0 = arith.constant 0 : i32
    %c0_i32_1 = arith.constant 0 : i32
    return %c0_i32, %c0_i32_0 : i32, i32
  }
  func.func @transform_11(%arg0: i32) -> (i32, i32) {
    %c0_i32 = arith.constant 0 : i32
    %c0_i32_0 = arith.constant 0 : i32
    %c0_i32_1 = arith.constant 0 : i32
    return %c0_i32, %c0_i32_0 : i32, i32
  }
  func.func @transform_12(%arg0: i32) -> (i32, i32, i32) {
    %c0_i32 = arith.constant 0 : i32
    %c0_i32_0 = arith.constant 0 : i32
    %c0_i32_1 = arith.constant 0 : i32
    return %arg0, %c0_i32, %c0_i32_0 : i32, i32, i32
  }
}

</mosaic_0001>

<llo_original>
// kernel: tpu_custom_call.1
$region0: #{tpu_custom_call.1}
  #allocation0 [shape = 'u32[]', space=smem, size = 0x4, offset = 0x4, fixed_abs, tag = 'smem constant byte address 0x4 - core index']
  #allocation1 [shape = 'u32[72,128]{1,0:T(1,128)}', space=vmem, size = 0x9000, scoped, tag = 'internal scratch']
  %s0 = inlined_call_operand.hbm [shape: f32[2,8,32], index: 0, kind: input, shape index: {}]
  %s1 = inlined_call_operand.hbm [shape: f32[2,16,32], index: 1, kind: input, shape index: {}]
  %s2 = inlined_call_operand.hbm [shape: f32[16,32], index: 2, kind: input, shape index: {}]
  %s3 = inlined_call_operand.vmem [shape: f32[1,32], index: 3, kind: input, shape index: {}]
  %s4 = inlined_call_operand.vmem [shape: f32[1,32], index: 4, kind: input, shape index: {}]
  %s5 = inlined_call_operand.hbm [shape: f32[32,32], index: 5, kind: input, shape index: {}]
  %s6 = inlined_call_operand.hbm [shape: f32[32,32], index: 6, kind: input, shape index: {}]
  %s7 = inlined_call_operand.hbm [shape: f32[32,32], index: 7, kind: input, shape index: {}]
  %s8 = inlined_call_operand.hbm [shape: f32[32,32], index: 8, kind: input, shape index: {}]
  %s9 = inlined_call_operand.hbm [shape: f32[32,32], index: 9, kind: input, shape index: {}]
  %s10 = inlined_call_operand.vmem [shape: f32[1,32], index: 10, kind: input, shape index: {}]
  %s11 = inlined_call_operand.vmem [shape: f32[1,32], index: 11, kind: input, shape index: {}]
  %s12 = inlined_call_operand.hbm [shape: f32[2,8,32], index: 12, kind: output, shape index: {}]
  %s13 = sld [smem:[#allocation0]]
  $region113: #{tpu_custom_call.1} parent=0
    _
  %s15 = ssub.s32 1, %s13
  %s16 = scalar_select 0, %s15, %s13
  $region1: #{tpu_custom_call.1} parent=0
    #allocation2 [shape = 'u8[8192]{0}', space=vmem, size = 0x2000, scoped, tag = 'input window, operand 0']
    #allocation3 [shape = 's32[2]{0}', space=sflag, size = 0x8, scoped, tag = 'scoped memory for tpu_custom_call.1']
    #allocation4 [shape = 's32[2]{0}', space=sflag, size = 0x8, scoped, tag = 'scoped memory for tpu_custom_call.1']
    #allocation5 [shape = 'u8[16384]{0}', space=vmem, size = 0x4000, scoped, tag = 'input window, operand 1']
    #allocation6 [shape = 's32[2]{0}', space=sflag, size = 0x8, scoped, tag = 'scoped memory for tpu_custom_call.1']
    #allocation7 [shape = 'u8[8192]{0}', space=vmem, size = 0x2000, scoped, tag = 'input window, operand 2, single buffered']
    #allocation8 [shape = 'u8[16384]{0}', space=vmem, size = 0x4000, scoped, tag = 'input window, operand 5, single buffered']
    #allocation9 [shape = 's32[1]{0}', space=sflag, size = 0x4, scoped, tag = 'scoped memory for tpu_custom_call.1']
    #allocation10 [shape = 'u8[16384]{0}', space=vmem, size = 0x4000, scoped, tag = 'input window, operand 6, single buffered']
    #allocation11 [shape = 'u8[16384]{0}', space=vmem, size = 0x4000, scoped, tag = 'input window, operand 7, single buffered']
    #allocation12 [shape = 's32[1]{0}', space=sflag, size = 0x4, scoped, tag = 'scoped memory for tpu_custom_call.1']
    #allocation13 [shape = 'u8[16384]{0}', space=vmem, size = 0x4000, scoped, tag = 'input window, operand 8, single buffered']
    #allocation14 [shape = 'u8[16384]{0}', space=vmem, size = 0x4000, scoped, tag = 'input window, operand 9, single buffered']
    #allocation15 [shape = 's32[1]{0}', space=sflag, size = 0x4, scoped, tag = 'scoped memory for tpu_custom_call.1']
    #allocation16 [shape = 'u8[8192]{0}', space=vmem, size = 0x2000, scoped, tag = 'output window, operand 0']
    %17 = vsyncpa [#allocation3], 0
    %s18 = scalar_lea.sflag [#allocation3], 1
    %19 = vsyncpa %s18, 0
    %20 = vsyncpa [#allocation6], 0
    %s21 = scalar_lea.sflag [#allocation6], 1
    %22 = vsyncpa %s21, 0
    %23 = vsyncpa [#allocation9], 0
    %24 = vsyncpa [#allocation12], 0
    %25 = vsyncpa [#allocation15], 0
    %26 = vsyncpa [#allocation4], 0
    %s27 = scalar_lea.sflag [#allocation4], 1
    %28 = vsyncpa %s27, 0
    loop: start=0, step=1, limit=4
    $region2: #{tpu_custom_call.1} parent=1 // loop_pre_header
      _
    $region3: #{tpu_custom_call.1} parent=1 // loop_header
      %s30 = sphi 0, %s34
      %p31 = scmp.ge.s32.totalorder %s30, 4
      %s40 = sphi 0, %s42
      %s43 = sphi 0, %s40
      %s44 = sphi 0, %s43
      %s60 = sphi 0, %s44
      %s66 = sphi 0, %s68
      %s69 = sphi 0, %s66
      %s70 = sphi 0, %s69
      %s86 = sphi 0, %s70
      %s90 = sphi 0, %s90
      %s92 = sphi 0, %s90
      %s93 = sphi 0, %s92
      %s107 = sphi 0, %s93
      %s111 = sphi 0, %s111
      %s113 = sphi 0, %s111
      %s114 = sphi 0, %s113
      %s128 = sphi 0, %s114
      %s132 = sphi 0, %s132
      %s134 = sphi 0, %s132
      %s135 = sphi 0, %s134
      %s149 = sphi 0, %s135
      %s153 = sphi 0, %s153
      %s155 = sphi 0, %s153
      %s156 = sphi 0, %s155
      %s170 = sphi 0, %s156
      %s174 = sphi 0, %s174
      %s176 = sphi 0, %s174
      %s177 = sphi 0, %s176
      %s191 = sphi 0, %s177
      %s195 = sphi 0, %s195
      %s197 = sphi 0, %s195
      %s198 = sphi 0, %s197
      %s212 = sphi 0, %s198
      %s216 = sphi 0, %s216
      %s218 = sphi 0, %s216
      %s219 = sphi 0, %s218
      %s233 = sphi 0, %s219
      %s237 = sphi 0, %s237
      %s239 = sphi 0, %s237
      %s240 = sphi 0, %s239
      %s254 = sphi 0, %s240
      %s258 = sphi 0, %s258
      %s260 = sphi 0, %s258
      %s261 = sphi 0, %s260
      %s275 = sphi 0, %s261
      %s279 = sphi 0, %s279
      %s281 = sphi 0, %s279
      %s282 = sphi 0, %s281
      %s296 = sphi 0, %s282
      %s302 = sphi 0, %s304
      %s305 = sphi 0, %s302
      %s306 = sphi 0, %s305
      %s322 = sphi 0, %s306
    $region4: #{tpu_custom_call.1} parent=1 // loop_header_branch
      %33 = sbr.rel (%p31) target = $region8
    $region5: #{tpu_custom_call.1} parent=1 // loop_body
      %s35 = ssub.s32 %s30, 1
      %s36 = ssub.s32 %s30, 2
      %s37 = sadd.s32 %s30, 1
      %s38 = ssub.s32 %s30, %s37
      %p39 = scmp.eq.s32.totalorder %s38, 0
      %s41 = sadd.s32 %s40, 1
      %s42 = scalar_select %p39, %s40, %s41
      %p45 = pneg %p39
      %p46 = scmp.eq.s32.totalorder %s30, 1
      %p47 = por %p45, %p46
      %p48 = scmp.ne.s32.totalorder %s40, %s43
      %p49 = scmp.eq.s32.totalorder %s30, 0
      %p50 = por %p48, %p49
      %p51 = scmp.ne.s32.totalorder %s40, %s43
      %p52 = scmp.eq.s32.totalorder %s35, 1
      %p53 = por %p51, %p52
      %p54 = scmp.ne.s32.totalorder %s43, %s44
      %p55 = scmp.eq.s32.totalorder %s35, 0
      %p56 = por %p54, %p55
      %p57 = scmp.ne.s32.totalorder %s43, %s44
      %p58 = scmp.eq.s32.totalorder %s36, 1
      %p59 = por %p57, %p58
      %p61 = scmp.ne.s32.totalorder %s44, %s60
      %p62 = scmp.eq.s32.totalorder %s36, 0
      %p63 = por %p61, %p62
      %s64 = ssub.s32 %s30, %s37
      %p65 = scmp.eq.s32.totalorder %s64, 0
      %s67 = sadd.s32 %s66, 1
      %s68 = scalar_select %p65, %s66, %s67
      %p71 = pneg %p65
      %p72 = scmp.eq.s32.totalorder %s30, 1
      %p73 = por %p71, %p72
      %p74 = scmp.ne.s32.totalorder %s66, %s69
      %p75 = scmp.eq.s32.totalorder %s30, 0
      %p76 = por %p74, %p75
      %p77 = scmp.ne.s32.totalorder %s66, %s69
      %p78 = scmp.eq.s32.totalorder %s35, 1
      %p79 = por %p77, %p78
      %p80 = scmp.ne.s32.totalorder %s69, %s70
      %p81 = scmp.eq.s32.totalorder %s35, 0
      %p82 = por %p80, %p81
      %p83 = scmp.ne.s32.totalorder %s69, %s70
      %p84 = scmp.eq.s32.totalorder %s36, 1
      %p85 = por %p83, %p84
      %p87 = scmp.ne.s32.totalorder %s70, %s86
      %p88 = scmp.eq.s32.totalorder %s36, 0
      %p89 = por %p87, %p88
      %s91 = sadd.s32 %s90, 1
      %p94 = scmp.eq.s32.totalorder %s30, 1
      %p95 = scmp.ne.s32.totalorder %s90, %s92
      %p96 = scmp.eq.s32.totalorder %s30, 0
      %p97 = por %p95, %p96
      %p98 = scmp.ne.s32.totalorder %s90, %s92
      %p99 = scmp.eq.s32.totalorder %s35, 1
      %p100 = por %p98, %p99
      %p101 = scmp.ne.s32.totalorder %s92, %s93
      %p102 = scmp.eq.s32.totalorder %s35, 0
      %p103 = por %p101, %p102
      %p104 = scmp.ne.s32.totalorder %s92, %s93
      %p105 = scmp.eq.s32.totalorder %s36, 1
      %p106 = por %p104, %p105
      %p108 = scmp.ne.s32.totalorder %s93, %s107
      %p109 = scmp.eq.s32.totalorder %s36, 0
      %p110 = por %p108, %p109
      %s112 = sadd.s32 %s111, 1
      %p115 = scmp.eq.s32.totalorder %s30, 1
      %p116 = scmp.ne.s32.totalorder %s111, %s113
      %p117 = scmp.eq.s32.totalorder %s30, 0
      %p118 = por %p116, %p117
      %p119 = scmp.ne.s32.totalorder %s111, %s113
      %p120 = scmp.eq.s32.totalorder %s35, 1
      %p121 = por %p119, %p120
      %p122 = scmp.ne.s32.totalorder %s113, %s114
      %p123 = scmp.eq.s32.totalorder %s35, 0
      %p124 = por %p122, %p123
      %p125 = scmp.ne.s32.totalorder %s113, %s114
      %p126 = scmp.eq.s32.totalorder %s36, 1
      %p127 = por %p125, %p126
      %p129 = scmp.ne.s32.totalorder %s114, %s128
      %p130 = scmp.eq.s32.totalorder %s36, 0
      %p131 = por %p129, %p130
      %s133 = sadd.s32 %s132, 1
      %p136 = scmp.eq.s32.totalorder %s30, 1
      %p137 = scmp.ne.s32.totalorder %s132, %s134
      %p138 = scmp.eq.s32.totalorder %s30, 0
      %p139 = por %p137, %p138
      %p140 = scmp.ne.s32.totalorder %s132, %s134
      %p141 = scmp.eq.s32.totalorder %s35, 1
      %p142 = por %p140, %p141
      %p143 = scmp.ne.s32.totalorder %s134, %s135
      %p144 = scmp.eq.s32.totalorder %s35, 0
      %p145 = por %p143, %p144
      %p146 = scmp.ne.s32.totalorder %s134, %s135
      %p147 = scmp.eq.s32.totalorder %s36, 1
      %p148 = por %p146, %p147
      %p150 = scmp.ne.s32.totalorder %s135, %s149
      %p151 = scmp.eq.s32.totalorder %s36, 0
      %p152 = por %p150, %p151
      %s154 = sadd.s32 %s153, 1
      %p157 = scmp.eq.s32.totalorder %s30, 1
      %p158 = scmp.ne.s32.totalorder %s153, %s155
      %p159 = scmp.eq.s32.totalorder %s30, 0
      %p160 = por %p158, %p159
      %p161 = scmp.ne.s32.totalorder %s153, %s155
      %p162 = scmp.eq.s32.totalorder %s35, 1
      %p163 = por %p161, %p162
      %p164 = scmp.ne.s32.totalorder %s155, %s156
      %p165 = scmp.eq.s32.totalorder %s35, 0
      %p166 = por %p164, %p165
      %p167 = scmp.ne.s32.totalorder %s155, %s156
      %p168 = scmp.eq.s32.totalorder %s36, 1
      %p169 = por %p167, %p168
      %p171 = scmp.ne.s32.totalorder %s156, %s170
      %p172 = scmp.eq.s32.totalorder %s36, 0
      %p173 = por %p171, %p172
      %s175 = sadd.s32 %s174, 1
      %p178 = scmp.eq.s32.totalorder %s30, 1
      %p179 = scmp.ne.s32.totalorder %s174, %s176
      %p180 = scmp.eq.s32.totalorder %s30, 0
      %p181 = por %p179, %p180
      %p182 = scmp.ne.s32.totalorder %s174, %s176
      %p183 = scmp.eq.s32.totalorder %s35, 1
      %p184 = por %p182, %p183
      %p185 = scmp.ne.s32.totalorder %s176, %s177
      %p186 = scmp.eq.s32.totalorder %s35, 0
      %p187 = por %p185, %p186
      %p188 = scmp.ne.s32.totalorder %s176, %s177
      %p189 = scmp.eq.s32.totalorder %s36, 1
      %p190 = por %p188, %p189
      %p192 = scmp.ne.s32.totalorder %s177, %s191
      %p193 = scmp.eq.s32.totalorder %s36, 0
      %p194 = por %p192, %p193
      %s196 = sadd.s32 %s195, 1
      %p199 = scmp.eq.s32.totalorder %s30, 1
      %p200 = scmp.ne.s32.totalorder %s195, %s197
      %p201 = scmp.eq.s32.totalorder %s30, 0
      %p202 = por %p200, %p201
      %p203 = scmp.ne.s32.totalorder %s195, %s197
      %p204 = scmp.eq.s32.totalorder %s35, 1
      %p205 = por %p203, %p204
      %p206 = scmp.ne.s32.totalorder %s197, %s198
      %p207 = scmp.eq.s32.totalorder %s35, 0
      %p208 = por %p206, %p207
      %p209 = scmp.ne.s32.totalorder %s197, %s198
      %p210 = scmp.eq.s32.totalorder %s36, 1
      %p211 = por %p209, %p210
      %p213 = scmp.ne.s32.totalorder %s198, %s212
      %p214 = scmp.eq.s32.totalorder %s36, 0
      %p215 = por %p213, %p214
      %s217 = sadd.s32 %s216, 1
      %p220 = scmp.eq.s32.totalorder %s30, 1
      %p221 = scmp.ne.s32.totalorder %s216, %s218
      %p222 = scmp.eq.s32.totalorder %s30, 0
      %p223 = por %p221, %p222
      %p224 = scmp.ne.s32.totalorder %s216, %s218
      %p225 = scmp.eq.s32.totalorder %s35, 1
      %p226 = por %p224, %p225
      %p227 = scmp.ne.s32.totalorder %s218, %s219
      %p228 = scmp.eq.s32.totalorder %s35, 0
      %p229 = por %p227, %p228
      %p230 = scmp.ne.s32.totalorder %s218, %s219
      %p231 = scmp.eq.s32.totalorder %s36, 1
      %p232 = por %p230, %p231
      %p234 = scmp.ne.s32.totalorder %s219, %s233
      %p235 = scmp.eq.s32.totalorder %s36, 0
      %p236 = por %p234, %p235
      %s238 = sadd.s32 %s237, 1
      %p241 = scmp.eq.s32.totalorder %s30, 1
      %p242 = scmp.ne.s32.totalorder %s237, %s239
      %p243 = scmp.eq.s32.totalorder %s30, 0
      %p244 = por %p242, %p243
      %p245 = scmp.ne.s32.totalorder %s237, %s239
      %p246 = scmp.eq.s32.totalorder %s35, 1
      %p247 = por %p245, %p246
      %p248 = scmp.ne.s32.totalorder %s239, %s240
      %p249 = scmp.eq.s32.totalorder %s35, 0
      %p250 = por %p248, %p249
      %p251 = scmp.ne.s32.totalorder %s239, %s240
      %p252 = scmp.eq.s32.totalorder %s36, 1
      %p253 = por %p251, %p252
      %p255 = scmp.ne.s32.totalorder %s240, %s254
      %p256 = scmp.eq.s32.totalorder %s36, 0
      %p257 = por %p255, %p256
      %s259 = sadd.s32 %s258, 1
      %p262 = scmp.eq.s32.totalorder %s30, 1
      %p263 = scmp.ne.s32.totalorder %s258, %s260
      %p264 = scmp.eq.s32.totalorder %s30, 0
      %p265 = por %p263, %p264
      %p266 = scmp.ne.s32.totalorder %s258, %s260
      %p267 = scmp.eq.s32.totalorder %s35, 1
      %p268 = por %p266, %p267
      %p269 = scmp.ne.s32.totalorder %s260, %s261
      %p270 = scmp.eq.s32.totalorder %s35, 0
      %p271 = por %p269, %p270
      %p272 = scmp.ne.s32.totalorder %s260, %s261
      %p273 = scmp.eq.s32.totalorder %s36, 1
      %p274 = por %p272, %p273
      %p276 = scmp.ne.s32.totalorder %s261, %s275
      %p277 = scmp.eq.s32.totalorder %s36, 0
      %p278 = por %p276, %p277
      %s280 = sadd.s32 %s279, 1
      %p283 = scmp.eq.s32.totalorder %s30, 1
      %p284 = scmp.ne.s32.totalorder %s279, %s281
      %p285 = scmp.eq.s32.totalorder %s30, 0
      %p286 = por %p284, %p285
      %p287 = scmp.ne.s32.totalorder %s279, %s281
      %p288 = scmp.eq.s32.totalorder %s35, 1
      %p289 = por %p287, %p288
      %p290 = scmp.ne.s32.totalorder %s281, %s282
      %p291 = scmp.eq.s32.totalorder %s35, 0
      %p292 = por %p290, %p291
      %p293 = scmp.ne.s32.totalorder %s281, %s282
      %p294 = scmp.eq.s32.totalorder %s36, 1
      %p295 = por %p293, %p294
      %p297 = scmp.ne.s32.totalorder %s282, %s296
      %p298 = scmp.eq.s32.totalorder %s36, 0
      %p299 = por %p297, %p298
      %s300 = ssub.s32 %s30, %s37
      %p301 = scmp.eq.s32.totalorder %s300, 0
      %s303 = sadd.s32 %s302, 1
      %s304 = scalar_select %p301, %s302, %s303
      %p307 = pneg %p301
      %p308 = scmp.eq.s32.totalorder %s30, 1
      %p309 = por %p307, %p308
      %p310 = scmp.ne.s32.totalorder %s302, %s305
      %p311 = scmp.eq.s32.totalorder %s30, 0
      %p312 = por %p310, %p311
      %p313 = scmp.ne.s32.totalorder %s302, %s305
      %p314 = scmp.eq.s32.totalorder %s35, 1
      %p315 = por %p313, %p314
      %p316 = scmp.ne.s32.totalorder %s305, %s306
      %p317 = scmp.eq.s32.totalorder %s35, 0
      %p318 = por %p316, %p317
      %p319 = scmp.ne.s32.totalorder %s305, %s306
      %p320 = scmp.eq.s32.totalorder %s36, 1
      %p321 = por %p319, %p320
      %p323 = scmp.ne.s32.totalorder %s306, %s322
      %p324 = scmp.eq.s32.totalorder %s36, 0
      %p325 = por %p323, %p324
      %p326 = scmp.le.s32.totalorder 1, %s30
      %p327 = scmp.lt.s32.totalorder %s30, 3
      %p328 = pnand %p326, %p327
      %p329 = pneg %p328
      // Predicated region
      $region9: #{tpu_custom_call.1} parent=5 // pred_check
        _
      $region10: #{tpu_custom_call.1} parent=5 // pred_check_branch
        %331 = sbr.rel (%p328) target = $region12
      $region11: #{tpu_custom_call.1} parent=5 // pred_region
        %s332 = ssub.s32 %s30, 1
        // Predicated region
        $region13: #{tpu_custom_call.1} parent=11 // pred_check
          %p333 = pneg %p103
        $region14: #{tpu_custom_call.1} parent=11 // pred_check_branch
          %335 = sbr.rel (%p333) target = $region16
        $region15: #{tpu_custom_call.1} parent=11 // pred_region
          %337 = vsyncadd [#allocation6], 0
          %s338 = sshll.u32 %s2, 4
          %s339 = int_to_ptr.hbm [resolvable:$true] %s338
          %s340 = sshll.u32 [#allocation7], 4
          %s341 = int_to_ptr.vmem [resolvable:$true] %s340
          %346 = dma.hbm_to_vmem [thread:$0]  %s339, 256, %s341, [#allocation6], 128, 128, 8
        $region16: #{tpu_custom_call.1} parent=11 // pred_fallthru
          _
        // Predicated region
        $region17: #{tpu_custom_call.1} parent=11 // pred_check
          %p347 = pneg %p124
        $region18: #{tpu_custom_call.1} parent=11 // pred_check_branch
          %349 = sbr.rel (%p347) target = $region20
        $region19: #{tpu_custom_call.1} parent=11 // pred_region
          _
        $region20: #{tpu_custom_call.1} parent=11 // pred_fallthru
          _
        // Predicated region
        $region21: #{tpu_custom_call.1} parent=11 // pred_check
          %p350 = pneg %p145
        $region22: #{tpu_custom_call.1} parent=11 // pred_check_branch
          %352 = sbr.rel (%p350) target = $region24
        $region23: #{tpu_custom_call.1} parent=11 // pred_region
          _
        $region24: #{tpu_custom_call.1} parent=11 // pred_fallthru
          _
        // Predicated region
        $region25: #{tpu_custom_call.1} parent=11 // pred_check
          %p353 = pneg %p166
        $region26: #{tpu_custom_call.1} parent=11 // pred_check_branch
          %355 = sbr.rel (%p353) target = $region28
        $region27: #{tpu_custom_call.1} parent=11 // pred_region
          %357 = vsyncadd [#allocation9], 0
          %s358 = sshll.u32 %s5, 4
          %s359 = int_to_ptr.hbm [resolvable:$true] %s358
          %s360 = sshll.u32 [#allocation8], 4
          %s361 = int_to_ptr.vmem [resolvable:$true] %s360
          %366 = dma.hbm_to_vmem [thread:$0]  %s359, 512, %s361, [#allocation9], 128, 128, 8
        $region28: #{tpu_custom_call.1} parent=11 // pred_fallthru
          _
        // Predicated region
        $region29: #{tpu_custom_call.1} parent=11 // pred_check
          %p367 = pneg %p187
        $region30: #{tpu_custom_call.1} parent=11 // pred_check_branch
          %369 = sbr.rel (%p367) target = $region32
        $region31: #{tpu_custom_call.1} parent=11 // pred_region
          %371 = vsyncadd [#allocation9], 0
          %s372 = sshll.u32 %s6, 4
          %s373 = int_to_ptr.hbm [resolvable:$true] %s372
          %s374 = sshll.u32 [#allocation10], 4
          %s375 = int_to_ptr.vmem [resolvable:$true] %s374
          %380 = dma.hbm_to_vmem [thread:$0]  %s373, 512, %s375, [#allocation9], 128, 128, 8
        $region32: #{tpu_custom_call.1} parent=11 // pred_fallthru
          _
        // Predicated region
        $region33: #{tpu_custom_call.1} parent=11 // pred_check
          %p381 = pneg %p208
        $region34: #{tpu_custom_call.1} parent=11 // pred_check_branch
          %383 = sbr.rel (%p381) target = $region36
        $region35: #{tpu_custom_call.1} parent=11 // pred_region
          %385 = vsyncadd [#allocation12], 0
          %s386 = sshll.u32 %s7, 4
          %s387 = int_to_ptr.hbm [resolvable:$true] %s386
          %s388 = sshll.u32 [#allocation11], 4
          %s389 = int_to_ptr.vmem [resolvable:$true] %s388
          %394 = dma.hbm_to_vmem [thread:$0]  %s387, 512, %s389, [#allocation12], 128, 128, 8
        $region36: #{tpu_custom_call.1} parent=11 // pred_fallthru
          _
        // Predicated region
        $region37: #{tpu_custom_call.1} parent=11 // pred_check
          %p395 = pneg %p229
        $region38: #{tpu_custom_call.1} parent=11 // pred_check_branch
          %397 = sbr.rel (%p395) target = $region40
        $region39: #{tpu_custom_call.1} parent=11 // pred_region
          %399 = vsyncadd [#allocation12], 0
          %s400 = sshll.u32 %s8, 4
          %s401 = int_to_ptr.hbm [resolvable:$true] %s400
          %s402 = sshll.u32 [#allocation13], 4
          %s403 = int_to_ptr.vmem [resolvable:$true] %s402
          %408 = dma.hbm_to_vmem [thread:$0]  %s401, 512, %s403, [#allocation12], 128, 128, 8
        $region40: #{tpu_custom_call.1} parent=11 // pred_fallthru
          _
        // Predicated region
        $region41: #{tpu_custom_call.1} parent=11 // pred_check
          %p409 = pneg %p250
        $region42: #{tpu_custom_call.1} parent=11 // pred_check_branch
          %411 = sbr.rel (%p409) target = $region44
        $region43: #{tpu_custom_call.1} parent=11 // pred_region
          %413 = vsyncadd [#allocation15], 0
          %s414 = sshll.u32 %s9, 4
          %s415 = int_to_ptr.hbm [resolvable:$true] %s414
          %s416 = sshll.u32 [#allocation14], 4
          %s417 = int_to_ptr.vmem [resolvable:$true] %s416
          %422 = dma.hbm_to_vmem [thread:$0]  %s415, 512, %s417, [#allocation15], 128, 128, 8
        $region44: #{tpu_custom_call.1} parent=11 // pred_fallthru
          _
        // Predicated region
        $region45: #{tpu_custom_call.1} parent=11 // pred_check
          %p423 = pneg %p271
        $region46: #{tpu_custom_call.1} parent=11 // pred_check_branch
          %425 = sbr.rel (%p423) target = $region48
        $region47: #{tpu_custom_call.1} parent=11 // pred_region
          _
        $region48: #{tpu_custom_call.1} parent=11 // pred_fallthru
          _
        // Predicated region
        $region49: #{tpu_custom_call.1} parent=11 // pred_check
          %p426 = pneg %p292
        $region50: #{tpu_custom_call.1} parent=11 // pred_check_branch
          %428 = sbr.rel (%p426) target = $region52
        $region51: #{tpu_custom_call.1} parent=11 // pred_region
          _
        $region52: #{tpu_custom_call.1} parent=11 // pred_fallthru
          _
      $region12: #{tpu_custom_call.1} parent=5 // pred_fallthru
        _
      %p429 = scmp.lt.s32.totalorder %s30, 2
      // Predicated region
      $region53: #{tpu_custom_call.1} parent=5 // pred_check
        %p430 = pneg %p429
      $region54: #{tpu_custom_call.1} parent=5 // pred_check_branch
        %432 = sbr.rel (%p430) target = $region56
      $region55: #{tpu_custom_call.1} parent=5 // pred_region
        // Predicated region
        $region57: #{tpu_custom_call.1} parent=55 // pred_check
          %p433 = pneg %p50
        $region58: #{tpu_custom_call.1} parent=55 // pred_check_branch
          %435 = sbr.rel (%p433) target = $region60
        $region59: #{tpu_custom_call.1} parent=55 // pred_region
          %s436 = sand.u32 %s40, 1
          %s437 = scalar_lea.sflag [#allocation3], %s436
          %s438 = sand.u32 %s40, 1
          %s439 = smul.addr %s438, 8
          %s440 = scalar_lea.vmem [#allocation2], %s439
          %442 = vsyncadd %s437, 0
          %s443 = smul.addr %s30, 8
          %s444 = scalar_lea.hbm %s0, %s443
          %s446 = sshll.u32 %s444, 4
          %s447 = int_to_ptr.hbm [resolvable:$true] %s446
          %s448 = sshll.u32 %s440, 4
          %s449 = int_to_ptr.vmem [resolvable:$true] %s448
          %451 = dma.hbm_to_vmem [thread:$0]  %s447, 128, %s449, %s437
        $region60: #{tpu_custom_call.1} parent=55 // pred_fallthru
          _
        // Predicated region
        $region61: #{tpu_custom_call.1} parent=55 // pred_check
          %p452 = pneg %p76
        $region62: #{tpu_custom_call.1} parent=55 // pred_check_branch
          %454 = sbr.rel (%p452) target = $region64
        $region63: #{tpu_custom_call.1} parent=55 // pred_region
          %s455 = sand.u32 %s30, 1
          %s456 = scalar_lea.sflag [#allocation6], %s455
          %s457 = sand.u32 %s66, 1
          %s458 = smul.addr %s457, 16
          %s459 = scalar_lea.vmem [#allocation5], %s458
          %461 = vsyncadd %s456, 0
          %s462 = smul.addr %s30, 2
          %s463 = smul.addr %s462, 8
          %s464 = scalar_lea.hbm %s1, %s463
          %s465 = sshll.u32 %s464, 4
          %s466 = int_to_ptr.hbm [resolvable:$true] %s465
          %s467 = sshll.u32 %s459, 4
          %s468 = int_to_ptr.vmem [resolvable:$true] %s467
          %473 = dma.hbm_to_vmem [thread:$0]  %s466, 256, %s468, %s456, 128, 128, 8
        $region64: #{tpu_custom_call.1} parent=55 // pred_fallthru
          _
      $region56: #{tpu_custom_call.1} parent=5 // pred_fallthru
        _
      %p474 = scmp.le.s32.totalorder 1, %s30
      %p475 = scmp.lt.s32.totalorder %s30, 3
      %p476 = pnand %p474, %p475
      %p477 = pneg %p476
      // Predicated region
      $region65: #{tpu_custom_call.1} parent=5 // pred_check
        _
      $region66: #{tpu_custom_call.1} parent=5 // pred_check_branch
        %479 = sbr.rel (%p476) target = $region68
      $region67: #{tpu_custom_call.1} parent=5 // pred_region
        %s480 = ssub.s32 %s30, 1
        %s481 = sand.u32 %s43, 1
        %s482 = scalar_lea.sflag [#allocation3], %s481
        %s483 = sand.u32 %s43, 1
        %s484 = smul.addr %s483, 8
        %s485 = scalar_lea.vmem [#allocation2], %s484
        // Predicated region
        $region69: #{tpu_custom_call.1} parent=67 // pred_check
          %p486 = pneg %p56
        $region70: #{tpu_custom_call.1} parent=67 // pred_check_branch
          %488 = sbr.rel (%p486) target = $region72
        $region71: #{tpu_custom_call.1} parent=67 // pred_region
          %490 = dma.done %s482, 128
        $region72: #{tpu_custom_call.1} parent=67 // pred_fallthru
          _
        %s491 = sand.u32 %s35, 1
        %s492 = scalar_lea.sflag [#allocation6], %s491
        %s493 = sand.u32 %s69, 1
        %s494 = smul.addr %s493, 16
        %s495 = scalar_lea.vmem [#allocation5], %s494
        // Predicated region
        $region73: #{tpu_custom_call.1} parent=67 // pred_check
          %p496 = pneg %p82
        $region74: #{tpu_custom_call.1} parent=67 // pred_check_branch
          %498 = sbr.rel (%p496) target = $region76
        $region75: #{tpu_custom_call.1} parent=67 // pred_region
          %500 = dma.done %s492, 256
        $region76: #{tpu_custom_call.1} parent=67 // pred_fallthru
          _
        // Predicated region
        $region77: #{tpu_custom_call.1} parent=67 // pred_check
          %p501 = pneg %p103
        $region78: #{tpu_custom_call.1} parent=67 // pred_check_branch
          %503 = sbr.rel (%p501) target = $region80
        $region79: #{tpu_custom_call.1} parent=67 // pred_region
          %505 = dma.done [#allocation6], 256
        $region80: #{tpu_custom_call.1} parent=67 // pred_fallthru
          _
        // Predicated region
        $region81: #{tpu_custom_call.1} parent=67 // pred_check
          %p506 = pneg %p166
        $region82: #{tpu_custom_call.1} parent=67 // pred_check_branch
          %508 = sbr.rel (%p506) target = $region84
        $region83: #{tpu_custom_call.1} parent=67 // pred_region
          %510 = dma.done [#allocation9], 512
        $region84: #{tpu_custom_call.1} parent=67 // pred_fallthru
          _
        // Predicated region
        $region85: #{tpu_custom_call.1} parent=67 // pred_check
          %p511 = pneg %p187
        $region86: #{tpu_custom_call.1} parent=67 // pred_check_branch
          %513 = sbr.rel (%p511) target = $region88
        $region87: #{tpu_custom_call.1} parent=67 // pred_region
          %515 = dma.done [#allocation9], 512
        $region88: #{tpu_custom_call.1} parent=67 // pred_fallthru
          _
        // Predicated region
        $region89: #{tpu_custom_call.1} parent=67 // pred_check
          %p516 = pneg %p208
        $region90: #{tpu_custom_call.1} parent=67 // pred_check_branch
          %518 = sbr.rel (%p516) target = $region92
        $region91: #{tpu_custom_call.1} parent=67 // pred_region
          %520 = dma.done [#allocation12], 512
        $region92: #{tpu_custom_call.1} parent=67 // pred_fallthru
          _
        // Predicated region
        $region93: #{tpu_custom_call.1} parent=67 // pred_check
          %p521 = pneg %p229
        $region94: #{tpu_custom_call.1} parent=67 // pred_check_branch
          %523 = sbr.rel (%p521) target = $region96
        $region95: #{tpu_custom_call.1} parent=67 // pred_region
          %525 = dma.done [#allocation12], 512
        $region96: #{tpu_custom_call.1} parent=67 // pred_fallthru
          _
        // Predicated region
        $region97: #{tpu_custom_call.1} parent=67 // pred_check
          %p526 = pneg %p250
        $region98: #{tpu_custom_call.1} parent=67 // pred_check_branch
          %528 = sbr.rel (%p526) target = $region100
        $region99: #{tpu_custom_call.1} parent=67 // pred_region
          %530 = dma.done [#allocation15], 512
        $region100: #{tpu_custom_call.1} parent=67 // pred_fallthru
          _
        %s531 = sand.u32 %s43, 1
        %s532 = scalar_lea.sflag [#allocation3], %s531
        %s533 = sand.u32 %s43, 1
        %s534 = smul.addr %s533, 8
        %s535 = scalar_lea.vmem [#allocation2], %s534
        %p536 = pneg %p56
        %p537 = pneg %p53
        %s538 = sand.u32 %s35, 1
        %s539 = scalar_lea.sflag [#allocation6], %s538
        %s540 = sand.u32 %s69, 1
        %s541 = smul.addr %s540, 16
        %s542 = scalar_lea.vmem [#allocation5], %s541
        %p543 = pneg %p82
        %p544 = pneg %p79
        %p545 = pneg %p103
        %p546 = pneg %p100
        %p547 = pneg %p124
        %p548 = pneg %p121
        %p549 = pneg %p145
        %p550 = pneg %p142
        %p551 = pneg %p166
        %p552 = pneg %p163
        %p553 = pneg %p187
        %p554 = pneg %p184
        %p555 = pneg %p208
        %p556 = pneg %p205
        %p557 = pneg %p229
        %p558 = pneg %p226
        %p559 = pneg %p250
        %p560 = pneg %p247
        %p561 = pneg %p271
        %p562 = pneg %p268
        %p563 = pneg %p292
        %p564 = pneg %p289
        %p565 = pneg %p318
        %p566 = pneg %p315
        %s567 = sand.u32 %s305, 1
        %s568 = scalar_lea.sflag [#allocation4], %s567
        %s569 = sand.u32 %s305, 1
        %s570 = smul.addr %s569, 8
        %s571 = scalar_lea.vmem [#allocation16], %s570
        %v572 = vld [vmem:[%s10] sm:$0x1]
        %v573 = vld [vmem:[%s11] sm:$0x1]
        %v574 = vld [vmem:[%s485] sm:$0xff]
        %v575 = vld [vmem:[%s495] sm:$0xff]
        %v576 = vld [vmem:[%s495 + $0x8] sm:$0xff]
        %v577 = vld [vmem:[#allocation8] sm:$0xff]
        %v578 = vld [vmem:[#allocation8 + $0x8] sm:$0xff]
        %v579 = vld [vmem:[#allocation8 + $0x10] sm:$0xff]
        %v580 = vld [vmem:[#allocation8 + $0x18] sm:$0xff]
        %vm581 = vcmask 261120
        %v583 = vsel %vm581, %v574, 0
        %585 = vmatpush.msra.mxu0 0.0
        %586 = vmatpush.msra.mxu0 0.0
        %587 = vmatpush.msra.mxu0 0.0
        %588 = vmatpush.msra.mxu0 0.0
        %589 = vmatpush.msra.mxu0 0.0
        %590 = vmatpush.msra.mxu0 0.0
        %591 = vmatpush.msra.mxu0 0.0
        %592 = vmatpush.msra.mxu0 0.0
        %593 = vmatpush.msra.mxu0 0.0
        %594 = vmatpush.msra.mxu0 0.0
        %595 = vmatpush.msra.mxu0 0.0
        %596 = vmatpush.msra.mxu0 0.0
        %597 = vmatpush.msra.mxu0 %v580
        %598 = vmatpush.msra.mxu0 %v579
        %599 = vmatpush.msra.mxu0 %v578
        %600 = vmatpush.msra.mxu0 %v577
        %601 = vmatmul.f32.gmra.mxu0 %v583
        %v602 = vpop.f32.mrf.mxu0
        %v603 = vadd.f32 0.0, %v602
        %604 = vdwg.mxu0
        %v605 = vld [vmem:[#allocation10] sm:$0xff]
        %v606 = vld [vmem:[#allocation10 + $0x8] sm:$0xff]
        %v607 = vld [vmem:[#allocation10 + $0x10] sm:$0xff]
        %v608 = vld [vmem:[#allocation10 + $0x18] sm:$0xff]
        %v610 = vsel %vm581, %v575, 0
        %v613 = vsel %vm581, %v576, 0
        %615 = vmatpush.msra.mxu0 0.0
        %616 = vmatpush.msra.mxu0 0.0
        %617 = vmatpush.msra.mxu0 0.0
        %618 = vmatpush.msra.mxu0 0.0
        %619 = vmatpush.msra.mxu0 0.0
        %620 = vmatpush.msra.mxu0 0.0
        %621 = vmatpush.msra.mxu0 0.0
        %622 = vmatpush.msra.mxu0 0.0
        %623 = vmatpush.msra.mxu0 0.0
        %624 = vmatpush.msra.mxu0 0.0
        %625 = vmatpush.msra.mxu0 0.0
        %626 = vmatpush.msra.mxu0 0.0
        %627 = vmatpush.msra.mxu0 %v608
        %628 = vmatpush.msra.mxu0 %v607
        %629 = vmatpush.msra.mxu0 %v606
        %630 = vmatpush.msra.mxu0 %v605
        %631 = vmatmul.f32.gmra.mxu0 %v610
        %v632 = vpop.f32.mrf.mxu0
        %v633 = vadd.f32 0.0, %v632
        %634 = vmatmul.f32.gmra.mxu0 %v613
        %v635 = vpop.f32.mrf.mxu0
        %v636 = vadd.f32 0.0, %v635
        %637 = vdwg.mxu0
        %v638 = vld [vmem:[#allocation11] sm:$0xff]
        %v639 = vld [vmem:[#allocation11 + $0x8] sm:$0xff]
        %v640 = vld [vmem:[#allocation11 + $0x10] sm:$0xff]
        %v641 = vld [vmem:[#allocation11 + $0x18] sm:$0xff]
        %642 = vmatpush.msra.mxu0 0.0
        %643 = vmatpush.msra.mxu0 0.0
        %644 = vmatpush.msra.mxu0 0.0
        %645 = vmatpush.msra.mxu0 0.0
        %646 = vmatpush.msra.mxu0 0.0
        %647 = vmatpush.msra.mxu0 0.0
        %648 = vmatpush.msra.mxu0 0.0
        %649 = vmatpush.msra.mxu0 0.0
        %650 = vmatpush.msra.mxu0 0.0
        %651 = vmatpush.msra.mxu0 0.0
        %652 = vmatpush.msra.mxu0 0.0
        %653 = vmatpush.msra.mxu0 0.0
        %654 = vmatpush.msra.mxu0 %v641
        %655 = vmatpush.msra.mxu0 %v640
        %656 = vmatpush.msra.mxu0 %v639
        %657 = vmatpush.msra.mxu0 %v638
        %658 = vmatmul.f32.gmra.mxu0 %v610
        %v659 = vpop.f32.mrf.mxu0
        %v660 = vadd.f32 0.0, %v659
        %661 = vmatmul.f32.gmra.mxu0 %v613
        %v662 = vpop.f32.mrf.mxu0
        %v663 = vadd.f32 0.0, %v662
        %664 = vdwg.mxu0
        %v665 = vld [vmem:[#allocation7] sm:$0xff]
        %v666 = vld [vmem:[#allocation7 + $0x8] sm:$0xff]
        %v667 = vld [vmem:[#allocation13] sm:$0xff]
        %v668 = vld [vmem:[#allocation13 + $0x8] sm:$0xff]
        %v669 = vld [vmem:[#allocation13 + $0x10] sm:$0xff]
        %v670 = vld [vmem:[#allocation13 + $0x18] sm:$0xff]
        %v672 = vsel %vm581, %v665, 0
        %v675 = vsel %vm581, %v666, 0
        %677 = vmatpush.msra.mxu0 0.0
        %678 = vmatpush.msra.mxu0 0.0
        %679 = vmatpush.msra.mxu0 0.0
        %680 = vmatpush.msra.mxu0 0.0
        %681 = vmatpush.msra.mxu0 0.0
        %682 = vmatpush.msra.mxu0 0.0
        %683 = vmatpush.msra.mxu0 0.0
        %684 = vmatpush.msra.mxu0 0.0
        %685 = vmatpush.msra.mxu0 0.0
        %686 = vmatpush.msra.mxu0 0.0
        %687 = vmatpush.msra.mxu0 0.0
        %688 = vmatpush.msra.mxu0 0.0
        %689 = vmatpush.msra.mxu0 %v670
        %690 = vmatpush.msra.mxu0 %v669
        %691 = vmatpush.msra.mxu0 %v668
        %692 = vmatpush.msra.mxu0 %v667
        %693 = vmatmul.f32.gmra.mxu0 %v672
        %v694 = vpop.f32.mrf.mxu0
        %v695 = vadd.f32 0.0, %v694
        %696 = vmatmul.f32.gmra.mxu0 %v675
        %v697 = vpop.f32.mrf.mxu0
        %v698 = vadd.f32 0.0, %v697
        %699 = vdwg.mxu0
        %v700 = vld [vmem:[%s3] sm:$0x1]
        %v702 = vperm.slane %v700, 0
        %v704 = vadd.f32 %v603, %v702
        %v705 = vld [vmem:[%s4] sm:$0x1]
        %v707 = vperm.slane %v705, 0
        %v709 = vadd.f32 %v603, %v707
        %v710 = vld [vmem:[#allocation14] sm:$0xff]
        %v711 = vld [vmem:[#allocation14 + $0x8] sm:$0xff]
        %v712 = vld [vmem:[#allocation14 + $0x10] sm:$0xff]
        %v713 = vld [vmem:[#allocation14 + $0x18] sm:$0xff]
        %vm714 = vcmask 64512
        %v716 = vsel %vm714, %v709, 0
        %v719 = vsel %vm714, %v695, 0
        %v722 = vsel %vm714, %v698, 0
        %724 = vmatpush.xpose.msra.mxu0 0.0
        %725 = vmatpush.xpose.msra.mxu0 0.0
        %726 = vmatpush.xpose.msra.mxu0 0.0
        %727 = vmatpush.xpose.msra.mxu0 0.0
        %728 = vmatpush.xpose.msra.mxu0 0.0
        %729 = vmatpush.xpose.msra.mxu0 0.0
        %730 = vmatpush.xpose.msra.mxu0 0.0
        %731 = vmatpush.xpose.msra.mxu0 0.0
        %732 = vmatpush.xpose.msra.mxu0 0.0
        %733 = vmatpush.xpose.msra.mxu0 0.0
        %734 = vmatpush.xpose.msra.mxu0 0.0
        %735 = vmatpush.xpose.msra.mxu0 0.0
        %736 = vmatpush.xpose.msra.mxu0 0.0
        %737 = vmatpush.xpose.msra.mxu0 0.0
        %738 = vmatpush.xpose.msra.mxu0 %v722
        %739 = vmatpush.xpose.msra.mxu0 %v719
        %740 = vmatmul.f32.gmra.mxu0 %v716
        %v741 = vpop.f32.mrf.mxu0
        %v742 = vadd.f32 0.0, %v741
        %743 = vdwg.mxu0
        %v745 = vsel %vm714, %v704, 0
        %v748 = vsel %vm714, %v633, 0
        %v751 = vsel %vm714, %v636, 0
        %753 = vmatpush.xpose.msra.mxu0 0.0
        %754 = vmatpush.xpose.msra.mxu0 0.0
        %755 = vmatpush.xpose.msra.mxu0 0.0
        %756 = vmatpush.xpose.msra.mxu0 0.0
        %757 = vmatpush.xpose.msra.mxu0 0.0
        %758 = vmatpush.xpose.msra.mxu0 0.0
        %759 = vmatpush.xpose.msra.mxu0 0.0
        %760 = vmatpush.xpose.msra.mxu0 0.0
        %761 = vmatpush.xpose.msra.mxu0 0.0
        %762 = vmatpush.xpose.msra.mxu0 0.0
        %763 = vmatpush.xpose.msra.mxu0 0.0
        %764 = vmatpush.xpose.msra.mxu0 0.0
        %765 = vmatpush.xpose.msra.mxu0 0.0
        %766 = vmatpush.xpose.msra.mxu0 0.0
        %767 = vmatpush.xpose.msra.mxu0 %v751
        %768 = vmatpush.xpose.msra.mxu0 %v748
        %769 = vmatmul.f32.gmra.mxu0 %v745
        %v770 = vpop.f32.mrf.mxu0
        %v771 = vadd.f32 %v742, %v770
        %772 = vdwg.mxu0
        %v773 = vmul.f32 %v771, 0.35355338
        %vm774 = vcmask 130048
        %v775 = vsel %vm774, %v773, -inf
        %776 = vmax.xlane.f32.xlu0 %v775
        %v777 = vpop.xlane.xlu0 %776
        %v778 = vsub.f32 %v773, %v777
        %v779 = vmul.f32 %v778, 1.442695
        %v780 = vpow.pop %v779
        %v781 = vsel %vm774, %v780, 0.0
        %782 = vadd.xlane.f32.xlu0 %v781
        %v783 = vpop.xlane.xlu0 %782
        %v784 = vrcp.pop %v783
        %v785 = vmul.f32 %v783, %v784
        %v786 = vsub.f32 1.0, %v785
        %v787 = vmul.f32 %v784, %v786
        %v788 = vadd.f32 %v784, %v787
        %vm789 = vweird.f32 %v783
        %vm790 = vweird.f32 %v784
        %vm791 = vmor %vm789, %vm790
        %v792 = vsel %vm791, %v784, %v788
        %v793 = vand.u32 2147483647, %v783
        %vm794 = vcmp.eq.f32.partialorder %v793, 8.507059e+37
        %v795 = vand.u32 %v783, 2147483648
        %v796 = vor.u32 1.1754944e-38, %v795
        %v797 = vsel %vm794, %v796, %v792
        %v798 = vmul.f32 %v780, %v797
        %v800 = vsel %vm774, %v798, 0
        %802 = vmatpush.msra.mxu0 0.0
        %803 = vmatpush.msra.mxu0 0.0
        %804 = vmatpush.msra.mxu0 0.0
        %805 = vmatpush.msra.mxu0 0.0
        %806 = vmatpush.msra.mxu0 0.0
        %807 = vmatpush.msra.mxu0 0.0
        %808 = vmatpush.msra.mxu0 0.0
        %809 = vmatpush.msra.mxu0 0.0
        %810 = vmatpush.msra.mxu0 0.0
        %811 = vmatpush.msra.mxu0 0.0
        %812 = vmatpush.msra.mxu0 0.0
        %813 = vmatpush.msra.mxu0 0.0
        %814 = vmatpush.msra.mxu0 0.0
        %815 = vmatpush.msra.mxu0 0.0
        %816 = vmatpush.msra.mxu0 %v663
        %817 = vmatpush.msra.mxu0 %v660
        %818 = vmatmul.f32.gmra.mxu0 %v800
        %v819 = vpop.f32.mrf.mxu0
        %v820 = vadd.f32 0.0, %v819
        %821 = vdwg.mxu0
        %822 = vrot.lane.b32.xlu0 %v709, 120
        %v823 = vpop.permute.xlu0 %822
        %824 = vrot.lane.b32.xlu0 %v695, 120
        %v825 = vpop.permute.xlu0 %824
        %826 = vrot.lane.b32.xlu0 %v698, 120
        %v827 = vpop.permute.xlu0 %826
        %v828 = vsel %vm714, %v823, 0
        %v830 = vsel %vm714, %v825, 0
        %v832 = vsel %vm714, %v827, 0
        %834 = vmatpush.xpose.msra.mxu0 0.0
        %835 = vmatpush.xpose.msra.mxu0 0.0
        %836 = vmatpush.xpose.msra.mxu0 0.0
        %837 = vmatpush.xpose.msra.mxu0 0.0
        %838 = vmatpush.xpose.msra.mxu0 0.0
        %839 = vmatpush.xpose.msra.mxu0 0.0
        %840 = vmatpush.xpose.msra.mxu0 0.0
        %841 = vmatpush.xpose.msra.mxu0 0.0
        %842 = vmatpush.xpose.msra.mxu0 0.0
        %843 = vmatpush.xpose.msra.mxu0 0.0
        %844 = vmatpush.xpose.msra.mxu0 0.0
        %845 = vmatpush.xpose.msra.mxu0 0.0
        %846 = vmatpush.xpose.msra.mxu0 0.0
        %847 = vmatpush.xpose.msra.mxu0 0.0
        %848 = vmatpush.xpose.msra.mxu0 %v832
        %849 = vmatpush.xpose.msra.mxu0 %v830
        %850 = vmatmul.f32.gmra.mxu0 %v828
        %v851 = vpop.f32.mrf.mxu0
        %v852 = vadd.f32 0.0, %v851
        %853 = vdwg.mxu0
        %854 = vrot.lane.b32.xlu0 %v704, 120
        %v855 = vpop.permute.xlu0 %854
        %856 = vrot.lane.b32.xlu0 %v633, 120
        %v857 = vpop.permute.xlu0 %856
        %858 = vrot.lane.b32.xlu0 %v636, 120
        %v859 = vpop.permute.xlu0 %858
        %v860 = vsel %vm714, %v855, 0
        %v862 = vsel %vm714, %v857, 0
        %v864 = vsel %vm714, %v859, 0
        %866 = vmatpush.xpose.msra.mxu0 0.0
        %867 = vmatpush.xpose.msra.mxu0 0.0
        %868 = vmatpush.xpose.msra.mxu0 0.0
        %869 = vmatpush.xpose.msra.mxu0 0.0
        %870 = vmatpush.xpose.msra.mxu0 0.0
        %871 = vmatpush.xpose.msra.mxu0 0.0
        %872 = vmatpush.xpose.msra.mxu0 0.0
        %873 = vmatpush.xpose.msra.mxu0 0.0
        %874 = vmatpush.xpose.msra.mxu0 0.0
        %875 = vmatpush.xpose.msra.mxu0 0.0
        %876 = vmatpush.xpose.msra.mxu0 0.0
        %877 = vmatpush.xpose.msra.mxu0 0.0
        %878 = vmatpush.xpose.msra.mxu0 0.0
        %879 = vmatpush.xpose.msra.mxu0 0.0
        %880 = vmatpush.xpose.msra.mxu0 %v864
        %881 = vmatpush.xpose.msra.mxu0 %v862
        %882 = vmatmul.f32.gmra.mxu0 %v860
        %v883 = vpop.f32.mrf.mxu0
        %v884 = vadd.f32 %v852, %v883
        %885 = vdwg.mxu0
        %v886 = vmul.f32 %v884, 0.35355338
        %v887 = vsel %vm774, %v886, -inf
        %888 = vmax.xlane.f32.xlu0 %v887
        %v889 = vpop.xlane.xlu0 %888
        %v890 = vsub.f32 %v886, %v889
        %v891 = vmul.f32 %v890, 1.442695
        %v892 = vpow.pop %v891
        %v893 = vsel %vm774, %v892, 0.0
        %894 = vadd.xlane.f32.xlu0 %v893
        %v895 = vpop.xlane.xlu0 %894
        %v896 = vrcp.pop %v895
        %v897 = vmul.f32 %v895, %v896
        %v898 = vsub.f32 1.0, %v897
        %v899 = vmul.f32 %v896, %v898
        %v900 = vadd.f32 %v896, %v899
        %vm901 = vweird.f32 %v895
        %vm902 = vweird.f32 %v896
        %vm903 = vmor %vm901, %vm902
        %v904 = vsel %vm903, %v896, %v900
        %v905 = vand.u32 2147483647, %v895
        %vm906 = vcmp.eq.f32.partialorder %v905, 8.507059e+37
        %v907 = vand.u32 %v895, 2147483648
        %v908 = vor.u32 1.1754944e-38, %v907
        %v909 = vsel %vm906, %v908, %v904
        %v910 = vmul.f32 %v892, %v909
        %913 = vrot.lane.b32.xlu0 %v660, 120
        %v914 = vpop.permute.xlu0 %913
        %915 = vrot.lane.b32.xlu0 %v663, 120
        %v916 = vpop.permute.xlu0 %915
        %v920 = vsel %vm774, %v910, 0
        %922 = vmatpush.msra.mxu0 0.0
        %923 = vmatpush.msra.mxu0 0.0
        %924 = vmatpush.msra.mxu0 0.0
        %925 = vmatpush.msra.mxu0 0.0
        %926 = vmatpush.msra.mxu0 0.0
        %927 = vmatpush.msra.mxu0 0.0
        %928 = vmatpush.msra.mxu0 0.0
        %929 = vmatpush.msra.mxu0 0.0
        %930 = vmatpush.msra.mxu0 0.0
        %931 = vmatpush.msra.mxu0 0.0
        %932 = vmatpush.msra.mxu0 0.0
        %933 = vmatpush.msra.mxu0 0.0
        %934 = vmatpush.msra.mxu0 0.0
        %935 = vmatpush.msra.mxu0 0.0
        %936 = vmatpush.msra.mxu0 %v916
        %937 = vmatpush.msra.mxu0 %v914
        %938 = vmatmul.f32.gmra.mxu0 %v920
        %v939 = vpop.f32.mrf.mxu0
        %v940 = vadd.f32 0.0, %v939
        %941 = vdwg.mxu0
        %v943 = vsel %vm714, %v940, 0
        %945 = vmatpush.msra.mxu0 0.0
        %946 = vmatpush.msra.mxu0 0.0
        %947 = vmatpush.msra.mxu0 0.0
        %948 = vmatpush.msra.mxu0 0.0
        %949 = vmatpush.msra.mxu0 0.0
        %950 = vmatpush.msra.mxu0 0.0
        %951 = vmatpush.msra.mxu0 0.0
        %952 = vmatpush.msra.mxu0 0.0
        %953 = vmatpush.msra.mxu0 0.0
        %954 = vmatpush.msra.mxu0 0.0
        %955 = vmatpush.msra.mxu0 0.0
        %956 = vmatpush.msra.mxu0 0.0
        %957 = vmatpush.msra.mxu0 0.0
        %958 = vmatpush.msra.mxu0 0.0
        %959 = vmatpush.msra.mxu0 0.0
        %960 = vmatpush.msra.mxu0 %v711
        %961 = vmatmul.f32.gmra.mxu0 %v943
        %v962 = vpop.f32.mrf.mxu0
        %v963 = vadd.f32 0.0, %v962
        %964 = vdwg.mxu0
        %v966 = vsel %vm714, %v820, 0
        %968 = vmatpush.msra.mxu0 0.0
        %969 = vmatpush.msra.mxu0 0.0
        %970 = vmatpush.msra.mxu0 0.0
        %971 = vmatpush.msra.mxu0 0.0
        %972 = vmatpush.msra.mxu0 0.0
        %973 = vmatpush.msra.mxu0 0.0
        %974 = vmatpush.msra.mxu0 0.0
        %975 = vmatpush.msra.mxu0 0.0
        %976 = vmatpush.msra.mxu0 0.0
        %977 = vmatpush.msra.mxu0 0.0
        %978 = vmatpush.msra.mxu0 0.0
        %979 = vmatpush.msra.mxu0 0.0
        %980 = vmatpush.msra.mxu0 0.0
        %981 = vmatpush.msra.mxu0 0.0
        %982 = vmatpush.msra.mxu0 0.0
        %983 = vmatpush.msra.mxu0 %v710
        %984 = vmatmul.f32.gmra.mxu0 %v966
        %v985 = vpop.f32.mrf.mxu0
        %v986 = vadd.f32 %v963, %v985
        %987 = vdwg.mxu0
        %988 = vrot.lane.b32.xlu0 %v709, 112
        %v989 = vpop.permute.xlu0 %988
        %990 = vrot.lane.b32.xlu0 %v695, 112
        %v991 = vpop.permute.xlu0 %990
        %992 = vrot.lane.b32.xlu0 %v698, 112
        %v993 = vpop.permute.xlu0 %992
        %v994 = vsel %vm714, %v989, 0
        %v996 = vsel %vm714, %v991, 0
        %v998 = vsel %vm714, %v993, 0
        %1000 = vmatpush.xpose.msra.mxu0 0.0
        %1001 = vmatpush.xpose.msra.mxu0 0.0
        %1002 = vmatpush.xpose.msra.mxu0 0.0
        %1003 = vmatpush.xpose.msra.mxu0 0.0
        %1004 = vmatpush.xpose.msra.mxu0 0.0
        %1005 = vmatpush.xpose.msra.mxu0 0.0
        %1006 = vmatpush.xpose.msra.mxu0 0.0
        %1007 = vmatpush.xpose.msra.mxu0 0.0
        %1008 = vmatpush.xpose.msra.mxu0 0.0
        %1009 = vmatpush.xpose.msra.mxu0 0.0
        %1010 = vmatpush.xpose.msra.mxu0 0.0
        %1011 = vmatpush.xpose.msra.mxu0 0.0
        %1012 = vmatpush.xpose.msra.mxu0 0.0
        %1013 = vmatpush.xpose.msra.mxu0 0.0
        %1014 = vmatpush.xpose.msra.mxu0 %v998
        %1015 = vmatpush.xpose.msra.mxu0 %v996
        %1016 = vmatmul.f32.gmra.mxu0 %v994
        %v1017 = vpop.f32.mrf.mxu0
        %v1018 = vadd.f32 0.0, %v1017
        %1019 = vdwg.mxu0
        %1020 = vrot.lane.b32.xlu0 %v704, 112
        %v1021 = vpop.permute.xlu0 %1020
        %1022 = vrot.lane.b32.xlu0 %v633, 112
        %v1023 = vpop.permute.xlu0 %1022
        %1024 = vrot.lane.b32.xlu0 %v636, 112
        %v1025 = vpop.permute.xlu0 %1024
        %v1026 = vsel %vm714, %v1021, 0
        %v1028 = vsel %vm714, %v1023, 0
        %v1030 = vsel %vm714, %v1025, 0
        %1032 = vmatpush.xpose.msra.mxu0 0.0
        %1033 = vmatpush.xpose.msra.mxu0 0.0
        %1034 = vmatpush.xpose.msra.mxu0 0.0
        %1035 = vmatpush.xpose.msra.mxu0 0.0
        %1036 = vmatpush.xpose.msra.mxu0 0.0
        %1037 = vmatpush.xpose.msra.mxu0 0.0
        %1038 = vmatpush.xpose.msra.mxu0 0.0
        %1039 = vmatpush.xpose.msra.mxu0 0.0
        %1040 = vmatpush.xpose.msra.mxu0 0.0
        %1041 = vmatpush.xpose.msra.mxu0 0.0
        %1042 = vmatpush.xpose.msra.mxu0 0.0
        %1043 = vmatpush.xpose.msra.mxu0 0.0
        %1044 = vmatpush.xpose.msra.mxu0 0.0
        %1045 = vmatpush.xpose.msra.mxu0 0.0
        %1046 = vmatpush.xpose.msra.mxu0 %v1030
        %1047 = vmatpush.xpose.msra.mxu0 %v1028
        %1048 = vmatmul.f32.gmra.mxu0 %v1026
        %v1049 = vpop.f32.mrf.mxu0
        %v1050 = vadd.f32 %v1018, %v1049
        %1051 = vdwg.mxu0
        %v1052 = vmul.f32 %v1050, 0.35355338
        %v1053 = vsel %vm774, %v1052, -inf
        %1054 = vmax.xlane.f32.xlu0 %v1053
        %v1055 = vpop.xlane.xlu0 %1054
        %v1056 = vsub.f32 %v1052, %v1055
        %v1057 = vmul.f32 %v1056, 1.442695
        %v1058 = vpow.pop %v1057
        %v1059 = vsel %vm774, %v1058, 0.0
        %1060 = vadd.xlane.f32.xlu0 %v1059
        %v1061 = vpop.xlane.xlu0 %1060
        %v1062 = vrcp.pop %v1061
        %v1063 = vmul.f32 %v1061, %v1062
        %v1064 = vsub.f32 1.0, %v1063
        %v1065 = vmul.f32 %v1062, %v1064
        %v1066 = vadd.f32 %v1062, %v1065
        %vm1067 = vweird.f32 %v1061
        %vm1068 = vweird.f32 %v1062
        %vm1069 = vmor %vm1067, %vm1068
        %v1070 = vsel %vm1069, %v1062, %v1066
        %v1071 = vand.u32 2147483647, %v1061
        %vm1072 = vcmp.eq.f32.partialorder %v1071, 8.507059e+37
        %v1073 = vand.u32 %v1061, 2147483648
        %v1074 = vor.u32 1.1754944e-38, %v1073
        %v1075 = vsel %vm1072, %v1074, %v1070
        %v1076 = vmul.f32 %v1058, %v1075
        %1077 = vrot.lane.b32.xlu0 %v660, 112
        %v1078 = vpop.permute.xlu0 %1077
        %1079 = vrot.lane.b32.xlu0 %v663, 112
        %v1080 = vpop.permute.xlu0 %1079
        %v1084 = vsel %vm774, %v1076, 0
        %1086 = vmatpush.msra.mxu0 0.0
        %1087 = vmatpush.msra.mxu0 0.0
        %1088 = vmatpush.msra.mxu0 0.0
        %1089 = vmatpush.msra.mxu0 0.0
        %1090 = vmatpush.msra.mxu0 0.0
        %1091 = vmatpush.msra.mxu0 0.0
        %1092 = vmatpush.msra.mxu0 0.0
        %1093 = vmatpush.msra.mxu0 0.0
        %1094 = vmatpush.msra.mxu0 0.0
        %1095 = vmatpush.msra.mxu0 0.0
        %1096 = vmatpush.msra.mxu0 0.0
        %1097 = vmatpush.msra.mxu0 0.0
        %1098 = vmatpush.msra.mxu0 0.0
        %1099 = vmatpush.msra.mxu0 0.0
        %1100 = vmatpush.msra.mxu0 %v1080
        %1101 = vmatpush.msra.mxu0 %v1078
        %1102 = vmatmul.f32.gmra.mxu0 %v1084
        %v1103 = vpop.f32.mrf.mxu0
        %v1104 = vadd.f32 0.0, %v1103
        %1105 = vdwg.mxu0
        %v1107 = vsel %vm714, %v1104, 0
        %1109 = vmatpush.msra.mxu0 0.0
        %1110 = vmatpush.msra.mxu0 0.0
        %1111 = vmatpush.msra.mxu0 0.0
        %1112 = vmatpush.msra.mxu0 0.0
        %1113 = vmatpush.msra.mxu0 0.0
        %1114 = vmatpush.msra.mxu0 0.0
        %1115 = vmatpush.msra.mxu0 0.0
        %1116 = vmatpush.msra.mxu0 0.0
        %1117 = vmatpush.msra.mxu0 0.0
        %1118 = vmatpush.msra.mxu0 0.0
        %1119 = vmatpush.msra.mxu0 0.0
        %1120 = vmatpush.msra.mxu0 0.0
        %1121 = vmatpush.msra.mxu0 0.0
        %1122 = vmatpush.msra.mxu0 0.0
        %1123 = vmatpush.msra.mxu0 0.0
        %1124 = vmatpush.msra.mxu0 %v712
        %1125 = vmatmul.f32.gmra.mxu0 %v1107
        %v1126 = vpop.f32.mrf.mxu0
        %v1127 = vadd.f32 0.0, %v1126
        %1128 = vdwg.mxu0
        %v1129 = vadd.f32 %v986, %v1127
        %1130 = vrot.lane.b32.xlu0 %v709, 104
        %v1131 = vpop.permute.xlu0 %1130
        %1132 = vrot.lane.b32.xlu0 %v695, 104
        %v1133 = vpop.permute.xlu0 %1132
        %1134 = vrot.lane.b32.xlu0 %v698, 104
        %v1135 = vpop.permute.xlu0 %1134
        %v1136 = vsel %vm714, %v1131, 0
        %v1138 = vsel %vm714, %v1133, 0
        %v1140 = vsel %vm714, %v1135, 0
        %1142 = vmatpush.xpose.msra.mxu0 0.0
        %1143 = vmatpush.xpose.msra.mxu0 0.0
        %1144 = vmatpush.xpose.msra.mxu0 0.0
        %1145 = vmatpush.xpose.msra.mxu0 0.0
        %1146 = vmatpush.xpose.msra.mxu0 0.0
        %1147 = vmatpush.xpose.msra.mxu0 0.0
        %1148 = vmatpush.xpose.msra.mxu0 0.0
        %1149 = vmatpush.xpose.msra.mxu0 0.0
        %1150 = vmatpush.xpose.msra.mxu0 0.0
        %1151 = vmatpush.xpose.msra.mxu0 0.0
        %1152 = vmatpush.xpose.msra.mxu0 0.0
        %1153 = vmatpush.xpose.msra.mxu0 0.0
        %1154 = vmatpush.xpose.msra.mxu0 0.0
        %1155 = vmatpush.xpose.msra.mxu0 0.0
        %1156 = vmatpush.xpose.msra.mxu0 %v1140
        %1157 = vmatpush.xpose.msra.mxu0 %v1138
        %1158 = vmatmul.f32.gmra.mxu0 %v1136
        %v1159 = vpop.f32.mrf.mxu0
        %v1160 = vadd.f32 0.0, %v1159
        %1161 = vdwg.mxu0
        %1162 = vrot.lane.b32.xlu0 %v704, 104
        %v1163 = vpop.permute.xlu0 %1162
        %1164 = vrot.lane.b32.xlu0 %v633, 104
        %v1165 = vpop.permute.xlu0 %1164
        %1166 = vrot.lane.b32.xlu0 %v636, 104
        %v1167 = vpop.permute.xlu0 %1166
        %v1168 = vsel %vm714, %v1163, 0
        %v1170 = vsel %vm714, %v1165, 0
        %v1172 = vsel %vm714, %v1167, 0
        %1174 = vmatpush.xpose.msra.mxu0 0.0
        %1175 = vmatpush.xpose.msra.mxu0 0.0
        %1176 = vmatpush.xpose.msra.mxu0 0.0
        %1177 = vmatpush.xpose.msra.mxu0 0.0
        %1178 = vmatpush.xpose.msra.mxu0 0.0
        %1179 = vmatpush.xpose.msra.mxu0 0.0
        %1180 = vmatpush.xpose.msra.mxu0 0.0
        %1181 = vmatpush.xpose.msra.mxu0 0.0
        %1182 = vmatpush.xpose.msra.mxu0 0.0
        %1183 = vmatpush.xpose.msra.mxu0 0.0
        %1184 = vmatpush.xpose.msra.mxu0 0.0
        %1185 = vmatpush.xpose.msra.mxu0 0.0
        %1186 = vmatpush.xpose.msra.mxu0 0.0
        %1187 = vmatpush.xpose.msra.mxu0 0.0
        %1188 = vmatpush.xpose.msra.mxu0 %v1172
        %1189 = vmatpush.xpose.msra.mxu0 %v1170
        %1190 = vmatmul.f32.gmra.mxu0 %v1168
        %v1191 = vpop.f32.mrf.mxu0
        %v1192 = vadd.f32 %v1160, %v1191
        %1193 = vdwg.mxu0
        %v1194 = vmul.f32 %v1192, 0.35355338
        %v1195 = vsel %vm774, %v1194, -inf
        %1196 = vmax.xlane.f32.xlu0 %v1195
        %v1197 = vpop.xlane.xlu0 %1196
        %v1198 = vsub.f32 %v1194, %v1197
        %v1199 = vmul.f32 %v1198, 1.442695
        %v1200 = vpow.pop %v1199
        %v1201 = vsel %vm774, %v1200, 0.0
        %1202 = vadd.xlane.f32.xlu0 %v1201
        %v1203 = vpop.xlane.xlu0 %1202
        %v1204 = vrcp.pop %v1203
        %v1205 = vmul.f32 %v1203, %v1204
        %v1206 = vsub.f32 1.0, %v1205
        %v1207 = vmul.f32 %v1204, %v1206
        %v1208 = vadd.f32 %v1204, %v1207
        %vm1209 = vweird.f32 %v1203
        %vm1210 = vweird.f32 %v1204
        %vm1211 = vmor %vm1209, %vm1210
        %v1212 = vsel %vm1211, %v1204, %v1208
        %v1213 = vand.u32 2147483647, %v1203
        %vm1214 = vcmp.eq.f32.partialorder %v1213, 8.507059e+37
        %v1215 = vand.u32 %v1203, 2147483648
        %v1216 = vor.u32 1.1754944e-38, %v1215
        %v1217 = vsel %vm1214, %v1216, %v1212
        %v1218 = vmul.f32 %v1200, %v1217
        %1219 = vrot.lane.b32.xlu0 %v660, 104
        %v1220 = vpop.permute.xlu0 %1219
        %1221 = vrot.lane.b32.xlu0 %v663, 104
        %v1222 = vpop.permute.xlu0 %1221
        %v1226 = vsel %vm774, %v1218, 0
        %1228 = vmatpush.msra.mxu0 0.0
        %1229 = vmatpush.msra.mxu0 0.0
        %1230 = vmatpush.msra.mxu0 0.0
        %1231 = vmatpush.msra.mxu0 0.0
        %1232 = vmatpush.msra.mxu0 0.0
        %1233 = vmatpush.msra.mxu0 0.0
        %1234 = vmatpush.msra.mxu0 0.0
        %1235 = vmatpush.msra.mxu0 0.0
        %1236 = vmatpush.msra.mxu0 0.0
        %1237 = vmatpush.msra.mxu0 0.0
        %1238 = vmatpush.msra.mxu0 0.0
        %1239 = vmatpush.msra.mxu0 0.0
        %1240 = vmatpush.msra.mxu0 0.0
        %1241 = vmatpush.msra.mxu0 0.0
        %1242 = vmatpush.msra.mxu0 %v1222
        %1243 = vmatpush.msra.mxu0 %v1220
        %1244 = vmatmul.f32.gmra.mxu0 %v1226
        %v1245 = vpop.f32.mrf.mxu0
        %v1246 = vadd.f32 0.0, %v1245
        %1247 = vdwg.mxu0
        %v1249 = vsel %vm714, %v1246, 0
        %1251 = vmatpush.msra.mxu0 0.0
        %1252 = vmatpush.msra.mxu0 0.0
        %1253 = vmatpush.msra.mxu0 0.0
        %1254 = vmatpush.msra.mxu0 0.0
        %1255 = vmatpush.msra.mxu0 0.0
        %1256 = vmatpush.msra.mxu0 0.0
        %1257 = vmatpush.msra.mxu0 0.0
        %1258 = vmatpush.msra.mxu0 0.0
        %1259 = vmatpush.msra.mxu0 0.0
        %1260 = vmatpush.msra.mxu0 0.0
        %1261 = vmatpush.msra.mxu0 0.0
        %1262 = vmatpush.msra.mxu0 0.0
        %1263 = vmatpush.msra.mxu0 0.0
        %1264 = vmatpush.msra.mxu0 0.0
        %1265 = vmatpush.msra.mxu0 0.0
        %1266 = vmatpush.msra.mxu0 %v713
        %1267 = vmatmul.f32.gmra.mxu0 %v1249
        %v1268 = vpop.f32.mrf.mxu0
        %v1269 = vadd.f32 0.0, %v1268
        %1270 = vdwg.mxu0
        %v1271 = vadd.f32 %v1129, %v1269
        %v1272 = vadd.f32 %v574, %v1271
        %v1273 = vsel %vm581, %v1272, 0.0
        %1274 = vadd.xlane.f32.xlu0 %v1273
        %v1275 = vpop.xlane.xlu0 %1274
        %v1276 = vrcp.pop 32.0
        %v1277 = vmul.f32 32.0, %v1276
        %v1278 = vsub.f32 1.0, %v1277
        %v1279 = vmul.f32 %v1276, %v1278
        %v1280 = vadd.f32 %v1276, %v1279
        %vm1281 = vweird.f32 %v1276
        %v1282 = vsel %vm1281, %v1276, %v1280
        %v1283 = vmul.f32 %v1275, %v1282
        %v1284 = vsub.f32 %v1272, %v1283
        %v1285 = vmul.f32 %v1284, %v1284
        %v1286 = vsel %vm581, %v1285, 0.0
        %1287 = vadd.xlane.f32.xlu0 %v1286
        %v1288 = vpop.xlane.xlu0 %1287
        %v1289 = vmul.f32 %v1288, %v1282
        %v1290 = vadd.f32 %v1289, 1e-05
        %v1291 = vrsqrt.pop %v1290
        %v1292 = vmul.f32 %v1291, %v1290
        %v1293 = vmul.f32 %v1292, %v1291
        %v1294 = vmul.f32 0.5, %v1293
        %v1295 = vsub.f32 1.5, %v1294
        %v1296 = vmul.f32 %v1291, %v1295
        %vm1297 = vweird.f32 %v1290
        %vm1298 = vweird.f32 %v1291
        %vm1299 = vmor %vm1297, %vm1298
        %v1300 = vsel %vm1299, %v1291, %v1296
        %v1301 = vmul.f32 %v1284, %v1300
        %v1303 = vperm.slane %v572, 0
        %v1305 = vmul.f32 %v1301, %v1303
        %v1307 = vperm.slane %v573, 0
        %v1309 = vadd.f32 %v1305, %v1307
        %1310 = vst.msk [vmem:[%s571] sm:$0xff] %vm581, %v1309
        %s1311 = sand.u32 %s305, 1
        %s1312 = scalar_lea.sflag [#allocation4], %s1311
        %s1313 = sand.u32 %s305, 1
        %s1314 = smul.addr %s1313, 8
        %s1315 = scalar_lea.vmem [#allocation16], %s1314
        // Predicated region
        $region101: #{tpu_custom_call.1} parent=67 // pred_check
          %p1316 = pneg %p315
        $region102: #{tpu_custom_call.1} parent=67 // pred_check_branch
          %1318 = sbr.rel (%p1316) target = $region104
        $region103: #{tpu_custom_call.1} parent=67 // pred_region
          %1320 = vsyncadd %s1312, 0
          %s1321 = smul.addr %s35, 8
          %s1322 = scalar_lea.hbm %s12, %s1321
          %s1324 = sshll.u32 %s1315, 4
          %s1325 = int_to_ptr.vmem [resolvable:$true] %s1324
          %s1326 = sshll.u32 %s1322, 4
          %s1327 = int_to_ptr.hbm [resolvable:$true] %s1326
          %1329 = dma.vmem_to_hbm [thread:$0]  %s1325, 128, %s1327, %s1312
        $region104: #{tpu_custom_call.1} parent=67 // pred_fallthru
          _
      $region68: #{tpu_custom_call.1} parent=5 // pred_fallthru
        _
      %p1330 = scmp.le.s32.totalorder 2, %s30
      // Predicated region
      $region105: #{tpu_custom_call.1} parent=5 // pred_check
        %p1331 = pneg %p1330
      $region106: #{tpu_custom_call.1} parent=5 // pred_check_branch
        %1333 = sbr.rel (%p1331) target = $region108
      $region107: #{tpu_custom_call.1} parent=5 // pred_region
        %s1334 = ssub.s32 %s30, 2
        // Predicated region
        $region109: #{tpu_custom_call.1} parent=107 // pred_check
          %p1335 = pneg %p321
        $region110: #{tpu_custom_call.1} parent=107 // pred_check_branch
          %1337 = sbr.rel (%p1335) target = $region112
        $region111: #{tpu_custom_call.1} parent=107 // pred_region
          %s1338 = sand.u32 %s306, 1
          %s1339 = scalar_lea.sflag [#allocation4], %s1338
          %s1340 = sand.u32 %s306, 1
          %s1341 = smul.addr %s1340, 8
          %s1342 = scalar_lea.vmem [#allocation16], %s1341
          %1344 = dma.done %s1339, 128
        $region112: #{tpu_custom_call.1} parent=107 // pred_fallthru
          _
      $region108: #{tpu_custom_call.1} parent=5 // pred_fallthru
        _
    $region6: #{tpu_custom_call.1} parent=1 // loop_footer
      %s34 = sadd.s32 1, %s30
    $region7: #{tpu_custom_call.1} parent=1 // loop_footer_branch
      %29 = sbr.rel target = $region3
    $region8: #{tpu_custom_call.1} parent=1 // loop_exit
      _
    %1345 = vsyncpa [#allocation3], 1
    %s1346 = scalar_lea.sflag [#allocation3], 1
    %1347 = vsyncpa %s1346, 1
    %1348 = vsyncpa [#allocation6], 1
    %s1349 = scalar_lea.sflag [#allocation6], 1
    %1350 = vsyncpa %s1349, 1
    %1351 = vsyncpa [#allocation9], 1
    %1352 = vsyncpa [#allocation12], 1
    %1353 = vsyncpa [#allocation15], 1
    %1354 = vsyncpa [#allocation4], 1
    %s1355 = scalar_lea.sflag [#allocation4], 1
    %1356 = vsyncpa %s1355, 1

</llo_original>
